<compile_context>
chip_gen: v6e
topology: v6e:2x2x1
jax: 0.10.0
libtpu: 0.0.40
codegen_flags: <defaults>
</compile_context>

<pallas_src>
import functools
import math

import jax
import jax.numpy as jnp
from jax.experimental import pallas as pl
from jax.experimental.pallas import tpu as pltpu

LANE = 128
_MiB = 1024 * 1024
# A-resident (fused multi-layer) path is used when its VMEM working set fits
# comfortably under the smallest per-core VMEM of the target chips (v7x: 64 MiB).
_FUSED_VMEM_BUDGET = 20 * _MiB


def _round_up(x, m):
    return (x + m - 1) // m * m


def _fused_vmem_bytes(n_pad, c_pad):
    """Rough VMEM working-set estimate for the A-resident fused kernel."""
    a = n_pad * n_pad * 2          # bf16 raw counts (allow double buffering)
    xcp = n_pad * c_pad
    return (2 * a                  # A (x2 buffers)
            + 2 * xcp * 4          # x0 input (x2 buffers)
            + 2 * xcp * 4          # output (x2 buffers)
            + 2 * xcp * 4          # two f32 scratch buffers (x, final)
            + xcp * 2              # bf16 scaled-x temporary
            + n_pad * 4)           # dinv column


# ----------------------------------------------------------------------------
# Kernel 1a: A-resident fused multi-layer propagation (small / medium graphs).
#   A (raw bf16 counts) is loaded into VMEM once; all num_layers propagation
#   steps, the per-layer bf16 recast, the final_x running sum and the final
#   1/(L+1) scaling all happen inside one kernel.
# ----------------------------------------------------------------------------
def _fused_prop_kernel(a_ref, s_ref, x0_ref, out_ref, x_sc, fin_sc, *, num_layers):
    s = s_ref[...]                      # (Np,1) f32  dinv = 1/sqrt(deg)
    x0 = x0_ref[...]                    # (Np,Cp) f32 id_embed
    x_sc[...] = x0
    fin_sc[...] = x0
    for _ in range(num_layers):         # static unroll; A stays VMEM-resident
        xs = (s * x_sc[...]).astype(jnp.bfloat16)          # column scaling dinv_j
        y = s * jnp.dot(a_ref[...], xs,                    # row scaling dinv_i
                        preferred_element_type=jnp.float32)
        x_sc[...] = y
        fin_sc[...] = fin_sc[...] + y
    out_ref[...] = fin_sc[...] * (1.0 / (num_layers + 1))


def _propagate_fused(a_counts, dinv_col, x0, num_layers):
    n_pad, c_pad = x0.shape
    return pl.pallas_call(
        functools.partial(_fused_prop_kernel, num_layers=num_layers),
        out_shape=jax.ShapeDtypeStruct((n_pad, c_pad), jnp.float32),
        grid_spec=pltpu.PrefetchScalarGridSpec(
            num_scalar_prefetch=0,
            grid=(1,),
            in_specs=[
                pl.BlockSpec((n_pad, n_pad), lambda i: (0, 0)),   # raw counts
                pl.BlockSpec((n_pad, 1), lambda i: (0, 0)),       # dinv column
                pl.BlockSpec((n_pad, c_pad), lambda i: (0, 0)),   # id_embed
            ],
            out_specs=pl.BlockSpec((n_pad, c_pad), lambda i: (0, 0)),
            scratch_shapes=[pltpu.VMEM((n_pad, c_pad), jnp.float32),
                            pltpu.VMEM((n_pad, c_pad), jnp.float32)],
        ),
        compiler_params=pltpu.CompilerParams(
            dimension_semantics=("arbitrary",),
            vmem_limit_bytes=32 * _MiB,     # safe on v5e/v6e/v7x; sized by budget check
        ),
    )(a_counts, dinv_col, x0)


# ----------------------------------------------------------------------------
# Kernel 1b: tiled single-layer propagation (large graphs).
#   grid=(N/TM, N/TK); f32 VMEM accumulator; the k==last branch applies the
#   row scaling, accumulates final_x in place (aliased output) and emits the
#   pre-scaled bf16 input for the next layer -- no XLA passes between layers.
# ----------------------------------------------------------------------------
def _layer_kernel(a_ref, s_ref, xs_ref, fin_in_ref, fin_out_ref, nxt_ref, acc_ref):
    k = pl.program_id(1)

    @pl.when(k == 0)
    def _():
        acc_ref[...] = jnp.zeros_like(acc_ref)

    acc_ref[...] += jnp.dot(a_ref[...], xs_ref[...],
                            preferred_element_type=jnp.float32)

    @pl.when(k == pl.num_programs(1) - 1)
    def _():
        s = s_ref[...]                                   # (tm,1) dinv rows
        y = s * acc_ref[...]                             # x_{l+1} tile (f32)
        fin_out_ref[...] = fin_in_ref[...] + y           # fused running sum
        nxt_ref[...] = (s * y).astype(nxt_ref.dtype)     # pre-scaled next-layer x (bf16)


def _lgc_layer_tiled(a_counts, dinv_col, xs, fin_in, *, tm, tk):
    n_pad, c_pad = fin_in.shape
    grid = (n_pad // tm, n_pad // tk)
    # v7x note: 2 TensorCores/chip -- the "parallel" row axis shards the work;
    # keep n_pad//tm >= a few tiles when raising TM on small graphs.
    return pl.pallas_call(
        _layer_kernel,
        out_shape=(jax.ShapeDtypeStruct((n_pad, c_pad), jnp.float32),
                   jax.ShapeDtypeStruct((n_pad, c_pad), jnp.bfloat16)),
        grid_spec=pltpu.PrefetchScalarGridSpec(
            num_scalar_prefetch=0,
            grid=grid,
            in_specs=[
                pl.BlockSpec((tm, tk), lambda i, k: (i, k)),      # raw counts tile
                pl.BlockSpec((tm, 1), lambda i, k: (i, 0)),       # dinv rows
                pl.BlockSpec((tk, c_pad), lambda i, k: (k, 0)),   # scaled x K-slice
                pl.BlockSpec((tm, c_pad), lambda i, k: (i, 0)),   # final_x (aliased in)
            ],
            out_specs=[
                pl.BlockSpec((tm, c_pad), lambda i, k: (i, 0)),   # final_x (aliased out)
                pl.BlockSpec((tm, c_pad), lambda i, k: (i, 0)),   # next scaled x (bf16)
            ],
            scratch_shapes=[pltpu.VMEM((tm, c_pad), jnp.float32)],
        ),
        input_output_aliases={3: 0},        # accumulate final_x in place (P8)
        compiler_params=pltpu.CompilerParams(
            dimension_semantics=("parallel", "arbitrary"),
            # Sized for tm=tk=512 (~3 MiB working set); <=48 MiB keeps >=25%
            # headroom on v7x's 64 MiB and is trivially fine on v5e/v6e.
            vmem_limit_bytes=48 * _MiB,
        ),
    )(a_counts, dinv_col, xs, fin_in)


def _propagate_tiled(a_counts, dinv_col, x0, num_layers, *, tm, tk):
    xs = (dinv_col * x0).astype(jnp.bfloat16)   # pre-scaled layer-0 input
    final_x = x0
    for _ in range(num_layers):
        final_x, xs = _lgc_layer_tiled(a_counts, dinv_col, xs, final_x, tm=tm, tk=tk)
    return final_x * (1.0 / (num_layers + 1))


# ----------------------------------------------------------------------------
# Kernel 2: fused prediction head over the [pos; neg] rows.
#   Linear(2Cp->Cp) on the MXU (bf16 in / f32 acc) -> LeakyReLU(0.2)
#   -> [Dropout eval=identity] -> Linear(Cp->1) as a VPU lane reduction.
# ----------------------------------------------------------------------------
def _pred_kernel(x_ref, w1_ref, b1_ref, w2_ref, b2_ref, out_ref):
    h = jnp.dot(x_ref[...], w1_ref[...],
                preferred_element_type=jnp.float32) + b1_ref[...]
    h = jnp.where(h > 0, h, 0.2 * h)          # LeakyReLU(negative_slope=0.2)
    # TODO(synk): Dropout(p=0.3) is identity in eval mode; train-mode RNG drop not implemented.
    y = jnp.sum(h * w2_ref[...], axis=-1, keepdims=True) + b2_ref[0]
    # Lane-dense store: broadcast the scalar column across 128 lanes; the
    # wrapper slices column 0 (avoids masked vst on a (rows,1) output).
    out_ref[...] = jnp.broadcast_to(y, out_ref.shape).astype(out_ref.dtype)


def pred_head(x, w1_pad, b1_pad, w2_row, b2, *, tm=128):
    rows, twoc = x.shape
    c_pad = w1_pad.shape[1]
    rows_pad = _round_up(rows, tm)
    x_p = (jnp.zeros((rows_pad, twoc), jnp.float32).at[:rows].set(x)
           ).astype(jnp.bfloat16)
    out = pl.pallas_call(
        _pred_kernel,
        out_shape=jax.ShapeDtypeStruct((rows_pad, LANE), jnp.float32),
        grid_spec=pltpu.PrefetchScalarGridSpec(
            num_scalar_prefetch=0,
            grid=(rows_pad // tm,),
            in_specs=[
                pl.BlockSpec((tm, twoc), lambda i: (i, 0)),         # rows tile (bf16)
                pl.BlockSpec((twoc, c_pad), lambda i: (0, 0)),      # w1 (bf16)
                pl.BlockSpec((1, c_pad), lambda i: (0, 0)),         # b1 (f32)
                pl.BlockSpec((1, c_pad), lambda i: (0, 0)),         # w2 row (f32)
                pl.BlockSpec(memory_space=pltpu.MemorySpace.SMEM),  # b2 scalar
            ],
            out_specs=pl.BlockSpec((tm, LANE), lambda i: (i, 0)),
        ),
        compiler_params=pltpu.CompilerParams(
            dimension_semantics=("parallel",),
        ),
    )(x_p, w1_pad.astype(jnp.bfloat16), b1_pad, w2_row, b2)
    return out[:rows, 0:1]


# ----------------------------------------------------------------------------
# Full forward (matches LightGCN.forward semantics, eval-mode dropout).
# ----------------------------------------------------------------------------
def lightgcn_forward(params, edge_index, n_id, *, neg_sample_num, num_layers,
                     force_tiled=False, tm=512, tk=512):
    id_embed = params["id_embed"]               # (N, C) f32 -- x = self.id_embed
    n, c = id_embed.shape
    c_pad = _round_up(c, LANE)                  # lane-dense channel dim

    use_fused = (not force_tiled) and (
        _fused_vmem_bytes(_round_up(n, LANE), c_pad) <= _FUSED_VMEM_BUDGET)
    if use_fused:
        n_pad = _round_up(n, LANE)
    else:
        n_pad = _round_up(n, math.lcm(tm, tk, LANE))   # no silently dropped rows

    # ---- graph glue: raw integer adjacency counts + 1/sqrt(deg) ------------
    # Scatter-ADD so parallel edges are counted like message-passing sums.
    src = edge_index[0]
    dst = edge_index[1]
    adj = jnp.zeros((n, n), jnp.float32).at[dst, src].add(1.0)
    deg = jnp.maximum(adj.sum(axis=1), 1.0)
    dinv = 1.0 / jnp.sqrt(deg)

    # Raw counts cast to bf16 (small integers are exact); normalization is
    # applied in-kernel via the f32 dinv column -> no N^2 a_norm materialize.
    a_counts = (jnp.zeros((n_pad, n_pad), jnp.float32)
                .at[:n, :n].set(adj)).astype(jnp.bfloat16)
    dinv_col = jnp.zeros((n_pad, 1), jnp.float32).at[:n, 0].set(dinv)
    x0 = jnp.zeros((n_pad, c_pad), jnp.float32).at[:n, :c].set(id_embed)

    # ---- multi-layer propagation + running mean (Pallas) -------------------
    if use_fused:
        final_x = _propagate_fused(a_counts, dinv_col, x0, num_layers)
    else:
        final_x = _propagate_tiled(a_counts, dinv_col, x0, num_layers, tm=tm, tk=tk)

    # ---- n_id split / gather / tile / concat (glue) ------------------------
    chunk = n_id.shape[0] // (2 + neg_sample_num)
    out_idx = n_id[:chunk]
    pos_idx = n_id[chunk:2 * chunk]
    neg_idx = n_id[2 * chunk:]

    out = final_x[out_idx]                      # (B, Cp)
    pos_out = final_x[pos_idx]                  # (B, Cp)
    neg_out = final_x[neg_idx]                  # (B*neg, Cp)
    tiled_out = jnp.tile(out, (1, neg_sample_num)).reshape(-1, c_pad)

    pos_in = jnp.concatenate([out, pos_out], axis=-1)        # (B, 2Cp)
    neg_in = jnp.concatenate([tiled_out, neg_out], axis=-1)  # (B*neg, 2Cp)
    all_in = jnp.concatenate([pos_in, neg_in], axis=0)       # (B_total, 2Cp)

    # ---- pred_head weights padded into the 128-lane layout -----------------
    w1, b1, w2, b2 = params["w1"], params["b1"], params["w2"], params["b2"]
    w1_pad = jnp.zeros((2 * c_pad, c_pad), jnp.float32)
    w1_pad = w1_pad.at[:c, :c].set(w1[:c])                   # rows for `out`
    w1_pad = w1_pad.at[c_pad:c_pad + c, :c].set(w1[c:])      # rows for pos/neg
    b1_pad = jnp.zeros((1, c_pad), jnp.float32).at[:, :c].set(b1)
    w2_row = jnp.zeros((1, c_pad), jnp.float32).at[:, :c].set(w2.reshape(1, c))
    b2_s = b2.reshape((1,))

    logits = pred_head(all_in, w1_pad, b1_pad, w2_row, b2_s)  # (B_total, 1)
    pos_logit = logits[:chunk]                                # (B, 1)
    neg_logits = logits[chunk:]                               # (B*neg, 1)
    return pos_logit, neg_logits


# ----------------------------------------------------------------------------
# Deterministic parameter / input construction and a single run
# ----------------------------------------------------------------------------
def init_params(key, num_nodes, in_channels):
    k_emb, k_w1, k_b1, k_w2, k_b2 = jax.random.split(key, 5)
    c = in_channels
    lim1 = 1.0 / jnp.sqrt(2.0 * c)
    lim2 = 1.0 / jnp.sqrt(float(c))
    return {
        "id_embed": jax.random.normal(k_emb, (num_nodes, c), jnp.float32) * 0.1,
        "w1": jax.random.uniform(k_w1, (2 * c, c), jnp.float32, -lim1, lim1),
        "b1": jax.random.uniform(k_b1, (1, c), jnp.float32, -lim1, lim1),
        "w2": jax.random.uniform(k_w2, (c, 1), jnp.float32, -lim2, lim2),
        "b2": jax.random.uniform(k_b2, (1, 1), jnp.float32, -lim2, lim2),
    }


if __name__ == "__main__":
    num_nodes = 256
    in_channels = 32
    num_layers = 2
    neg_sample_num = 2
    batch = 8                                   # n_id length = batch*(2+neg) = 32
    num_edges = 512

    key = jax.random.PRNGKey(0)
    k_params, k_src, k_dst, k_nid = jax.random.split(key, 4)
    params = init_params(k_params, num_nodes, in_channels)

    # Random undirected edge list (both directions included).
    src = jax.random.randint(k_src, (num_edges,), 0, num_nodes, jnp.int32)
    dst = jax.random.randint(k_dst, (num_edges,), 0, num_nodes, jnp.int32)
    edge_index = jnp.stack(
        [jnp.concatenate([src, dst]), jnp.concatenate([dst, src])], axis=0
    )                                            # (2, 2*num_edges)

    n_id = jax.random.randint(
        k_nid, (batch * (2 + neg_sample_num),), 0, num_nodes, jnp.int32
    )

    fwd = jax.jit(lightgcn_forward,
                  static_argnames=("neg_sample_num", "num_layers",
                                   "force_tiled", "tm", "tk"))

    # Default path: A-resident fused multi-layer kernel (N=256 fits VMEM).
    pos_logit, neg_logits = fwd(params, edge_index, n_id,
                                neg_sample_num=neg_sample_num,
                                num_layers=num_layers)
    jax.block_until_ready((pos_logit, neg_logits))

    # Also exercise the large-graph tiled/aliased path (small tiles on the toy
    # graph) and check the two paths agree.
    pos_t, neg_t = fwd(params, edge_index, n_id,
                       neg_sample_num=neg_sample_num, num_layers=num_layers,
                       force_tiled=True, tm=128, tk=128)
    jax.block_until_ready((pos_t, neg_t))

    assert pos_logit.shape == (batch, 1)
    assert neg_logits.shape == (batch * neg_sample_num, 1)
    assert bool(jnp.allclose(pos_logit, pos_t, atol=1e-2, rtol=1e-2))
    assert bool(jnp.allclose(neg_logits, neg_t, atol=1e-2, rtol=1e-2))
    print("KERNEL_OK")
</pallas_src>

<mosaic_0001>
module attributes {stable_mosaic.version = 11 : i64} {
  func.func private @main(%arg0: i32) attributes {dimension_semantics = [#tpu.dimension_semantics<core_parallel>], iteration_bounds = array<i64: 2>, tpu.core_type = #tpu.core_type<sc_scalar_subcore>, window_params = []} {
    return
  }
}

module attributes {stable_mosaic.version = 11 : i64} {
  func.func private @main(%arg0: i32) attributes {dimension_semantics = [#tpu.dimension_semantics<core_parallel>], iteration_bounds = array<i64: 2>, tpu.core_type = #tpu.core_type<sc_scalar_subcore>, window_params = []} {
    return
  }
}

module attributes {stable_mosaic.version = 11 : i64} {
  func.func @_fused_prop_kernel(%arg0: i32, %arg1: memref<256x256xbf16, #tpu.memory_space<vmem>>, %arg2: memref<256x1xf32, #tpu.memory_space<vmem>>, %arg3: memref<256x128xf32, #tpu.memory_space<vmem>>, %arg4: memref<256x128xf32, #tpu.memory_space<vmem>>, %arg5: memref<256x128xf32, #tpu.memory_space<vmem>>, %arg6: memref<256x128xf32, #tpu.memory_space<vmem>>) attributes {dimension_semantics = [#tpu.dimension_semantics<arbitrary>], iteration_bounds = array<i64: 1>, scalar_prefetch = 0 : i64, scratch_operands = 2 : i64, tpu.core_type = #tpu.core_type<tc>, window_params = [{pipeline_mode = #tpu.pipeline_mode<synchronous>, transform_indices = @transform_0, window_bounds = array<i64: 256, 256>}, {pipeline_mode = #tpu.pipeline_mode<synchronous>, transform_indices = @transform_1, window_bounds = array<i64: 256, 1>}, {pipeline_mode = #tpu.pipeline_mode<synchronous>, transform_indices = @transform_2, window_bounds = array<i64: 256, 128>}, {pipeline_mode = #tpu.pipeline_mode<synchronous>, transform_indices = @transform_3, window_bounds = array<i64: 256, 128>}]} {
    %c0 = arith.constant 0 : index
    %c0_0 = arith.constant 0 : index
    %0 = vector.load %arg2[%c0, %c0_0] : memref<256x1xf32, #tpu.memory_space<vmem>>, vector<256x1xf32>
    %c0_1 = arith.constant 0 : index
    %c0_2 = arith.constant 0 : index
    %1 = vector.load %arg3[%c0_1, %c0_2] : memref<256x128xf32, #tpu.memory_space<vmem>>, vector<256x128xf32>
    %c0_3 = arith.constant 0 : index
    %c0_4 = arith.constant 0 : index
    %2 = vector.load %arg5[%c0_3, %c0_4] : memref<256x128xf32, #tpu.memory_space<vmem>>, vector<256x128xf32>
    tpu.vector_store %arg5[%c0_3, %c0_4], %1 {strides = array<i32>} : memref<256x128xf32, #tpu.memory_space<vmem>>, vector<256x128xf32>,
    %c0_5 = arith.constant 0 : index
    %c0_6 = arith.constant 0 : index
    %3 = vector.load %arg6[%c0_5, %c0_6] : memref<256x128xf32, #tpu.memory_space<vmem>>, vector<256x128xf32>
    tpu.vector_store %arg6[%c0_5, %c0_6], %1 {strides = array<i32>} : memref<256x128xf32, #tpu.memory_space<vmem>>, vector<256x128xf32>,
    %c0_7 = arith.constant 0 : index
    %c0_8 = arith.constant 0 : index
    %4 = vector.load %arg5[%c0_7, %c0_8] : memref<256x128xf32, #tpu.memory_space<vmem>>, vector<256x128xf32>
    %5 = vector.broadcast %0 : vector<256x1xf32> to vector<256x128xf32>
    %6 = arith.mulf %5, %4 : vector<256x128xf32>
    %7 = arith.truncf %6 : vector<256x128xf32> to vector<256x128xbf16>
    %c0_9 = arith.constant 0 : index
    %c0_10 = arith.constant 0 : index
    %8 = vector.load %arg1[%c0_9, %c0_10] : memref<256x256xbf16, #tpu.memory_space<vmem>>, vector<256x256xbf16>
    %cst = arith.constant dense<0.000000e+00> : vector<256x128xf32>
    %9 = tpu.matmul %8, %7, %cst {dimension_numbers = #tpu.dot_dimension_numbers<[1], [0], [0], [1], [0, 0, 1, 1], [], []>} : vector<256x256xbf16>, vector<256x128xbf16>, vector<256x128xf32> -> vector<256x128xf32>
    %10 = vector.broadcast %0 : vector<256x1xf32> to vector<256x128xf32>
    %11 = arith.mulf %10, %9 : vector<256x128xf32>
    %c0_11 = arith.constant 0 : index
    %c0_12 = arith.constant 0 : index
    %12 = vector.load %arg5[%c0_11, %c0_12] : memref<256x128xf32, #tpu.memory_space<vmem>>, vector<256x128xf32>
    tpu.vector_store %arg5[%c0_11, %c0_12], %11 {strides = array<i32>} : memref<256x128xf32, #tpu.memory_space<vmem>>, vector<256x128xf32>,
    %c0_13 = arith.constant 0 : index
    %c0_14 = arith.constant 0 : index
    %13 = vector.load %arg6[%c0_13, %c0_14] : memref<256x128xf32, #tpu.memory_space<vmem>>, vector<256x128xf32>
    %14 = arith.addf %13, %11 : vector<256x128xf32>
    %c0_15 = arith.constant 0 : index
    %c0_16 = arith.constant 0 : index
    %15 = vector.load %arg6[%c0_15, %c0_16] : memref<256x128xf32, #tpu.memory_space<vmem>>, vector<256x128xf32>
    tpu.vector_store %arg6[%c0_15, %c0_16], %14 {strides = array<i32>} : memref<256x128xf32, #tpu.memory_space<vmem>>, vector<256x128xf32>,
    %c0_17 = arith.constant 0 : index
    %c0_18 = arith.constant 0 : index
    %16 = vector.load %arg5[%c0_17, %c0_18] : memref<256x128xf32, #tpu.memory_space<vmem>>, vector<256x128xf32>
    %17 = vector.broadcast %0 : vector<256x1xf32> to vector<256x128xf32>
    %18 = arith.mulf %17, %16 : vector<256x128xf32>
    %19 = arith.truncf %18 : vector<256x128xf32> to vector<256x128xbf16>
    %c0_19 = arith.constant 0 : index
    %c0_20 = arith.constant 0 : index
    %20 = vector.load %arg1[%c0_19, %c0_20] : memref<256x256xbf16, #tpu.memory_space<vmem>>, vector<256x256xbf16>
    %cst_21 = arith.constant dense<0.000000e+00> : vector<256x128xf32>
    %21 = tpu.matmul %20, %19, %cst_21 {dimension_numbers = #tpu.dot_dimension_numbers<[1], [0], [0], [1], [0, 0, 1, 1], [], []>} : vector<256x256xbf16>, vector<256x128xbf16>, vector<256x128xf32> -> vector<256x128xf32>
    %22 = vector.broadcast %0 : vector<256x1xf32> to vector<256x128xf32>
    %23 = arith.mulf %22, %21 : vector<256x128xf32>
    %c0_22 = arith.constant 0 : index
    %c0_23 = arith.constant 0 : index
    %24 = vector.load %arg5[%c0_22, %c0_23] : memref<256x128xf32, #tpu.memory_space<vmem>>, vector<256x128xf32>
    tpu.vector_store %arg5[%c0_22, %c0_23], %23 {strides = array<i32>} : memref<256x128xf32, #tpu.memory_space<vmem>>, vector<256x128xf32>,
    %c0_24 = arith.constant 0 : index
    %c0_25 = arith.constant 0 : index
    %25 = vector.load %arg6[%c0_24, %c0_25] : memref<256x128xf32, #tpu.memory_space<vmem>>, vector<256x128xf32>
    %26 = arith.addf %25, %23 : vector<256x128xf32>
    %c0_26 = arith.constant 0 : index
    %c0_27 = arith.constant 0 : index
    %27 = vector.load %arg6[%c0_26, %c0_27] : memref<256x128xf32, #tpu.memory_space<vmem>>, vector<256x128xf32>
    tpu.vector_store %arg6[%c0_26, %c0_27], %26 {strides = array<i32>} : memref<256x128xf32, #tpu.memory_space<vmem>>, vector<256x128xf32>,
    %c0_28 = arith.constant 0 : index
    %c0_29 = arith.constant 0 : index
    %28 = vector.load %arg6[%c0_28, %c0_29] : memref<256x128xf32, #tpu.memory_space<vmem>>, vector<256x128xf32>
    %cst_30 = arith.constant 0.333333343 : f32
    %29 = vector.broadcast %cst_30 : f32 to vector<256x128xf32>
    %30 = arith.mulf %28, %29 : vector<256x128xf32>
    %c0_31 = arith.constant 0 : index
    %c0_32 = arith.constant 0 : index
    %31 = vector.load %arg4[%c0_31, %c0_32] : memref<256x128xf32, #tpu.memory_space<vmem>>, vector<256x128xf32>
    tpu.vector_store %arg4[%c0_31, %c0_32], %30 {strides = array<i32>} : memref<256x128xf32, #tpu.memory_space<vmem>>, vector<256x128xf32>,
    return
  }
  func.func @transform_0(%arg0: i32) -> (i32, i32) {
    %c0_i32 = arith.constant 0 : i32
    %c0_i32_0 = arith.constant 0 : i32
    %c0_i32_1 = arith.constant 0 : i32
    return %c0_i32, %c0_i32_0 : i32, i32
  }
  func.func @transform_1(%arg0: i32) -> (i32, i32) {
    %c0_i32 = arith.constant 0 : i32
    %c0_i32_0 = arith.constant 0 : i32
    %c0_i32_1 = arith.constant 0 : i32
    return %c0_i32, %c0_i32_0 : i32, i32
  }
  func.func @transform_2(%arg0: i32) -> (i32, i32) {
    %c0_i32 = arith.constant 0 : i32
    %c0_i32_0 = arith.constant 0 : i32
    %c0_i32_1 = arith.constant 0 : i32
    return %c0_i32, %c0_i32_0 : i32, i32
  }
  func.func @transform_3(%arg0: i32) -> (i32, i32) {
    %c0_i32 = arith.constant 0 : i32
    %c0_i32_0 = arith.constant 0 : i32
    %c0_i32_1 = arith.constant 0 : i32
    return %c0_i32, %c0_i32_0 : i32, i32
  }
}

module attributes {stable_mosaic.version = 11 : i64} {
  func.func @_pred_kernel(%arg0: i32, %arg1: memref<128x256xbf16, #tpu.memory_space<vmem>>, %arg2: memref<256x128xbf16, #tpu.memory_space<vmem>>, %arg3: memref<1x128xf32, #tpu.memory_space<vmem>>, %arg4: memref<1x128xf32, #tpu.memory_space<vmem>>, %arg5: memref<1xf32, #tpu.memory_space<smem>>, %arg6: memref<128x128xf32, #tpu.memory_space<vmem>>) attributes {dimension_semantics = [#tpu.dimension_semantics<parallel>], iteration_bounds = array<i64: 1>, scalar_prefetch = 0 : i64, scratch_operands = 0 : i64, tpu.core_type = #tpu.core_type<tc>, window_params = [{transform_indices = @transform_0, window_bounds = array<i64: 128, 256>}, {pipeline_mode = #tpu.pipeline_mode<synchronous>, transform_indices = @transform_1, window_bounds = array<i64: 256, 128>}, {pipeline_mode = #tpu.pipeline_mode<synchronous>, transform_indices = @transform_2, window_bounds = array<i64: 1, 128>}, {pipeline_mode = #tpu.pipeline_mode<synchronous>, transform_indices = @transform_3, window_bounds = array<i64: 1, 128>}, {transform_indices = @transform_4, window_bounds = array<i64: 1>}, {transform_indices = @transform_5, window_bounds = array<i64: 128, 128>}]} {
    %c0 = arith.constant 0 : index
    %c0_0 = arith.constant 0 : index
    %0 = vector.load %arg1[%c0, %c0_0] : memref<128x256xbf16, #tpu.memory_space<vmem>>, vector<128x256xbf16>
    %c0_1 = arith.constant 0 : index
    %c0_2 = arith.constant 0 : index
    %1 = vector.load %arg2[%c0_1, %c0_2] : memref<256x128xbf16, #tpu.memory_space<vmem>>, vector<256x128xbf16>
    %cst = arith.constant dense<0.000000e+00> : vector<128x128xf32>
    %2 = tpu.matmul %0, %1, %cst {dimension_numbers = #tpu.dot_dimension_numbers<[1], [0], [0], [1], [0, 0, 1, 1], [], []>} : vector<128x256xbf16>, vector<256x128xbf16>, vector<128x128xf32> -> vector<128x128xf32>
    %c0_3 = arith.constant 0 : index
    %c0_4 = arith.constant 0 : index
    %3 = vector.load %arg3[%c0_3, %c0_4] : memref<1x128xf32, #tpu.memory_space<vmem>>, vector<1x128xf32>
    %4 = vector.broadcast %3 : vector<1x128xf32> to vector<128x128xf32>
    %5 = arith.addf %2, %4 : vector<128x128xf32>
    %cst_5 = arith.constant 0.000000e+00 : f32
    %6 = vector.broadcast %cst_5 : f32 to vector<128x128xf32>
    %7 = arith.cmpf ogt, %5, %6 : vector<128x128xf32>
    %cst_6 = arith.constant 2.000000e-01 : f32
    %8 = vector.broadcast %cst_6 : f32 to vector<128x128xf32>
    %9 = arith.mulf %8, %5 : vector<128x128xf32>
    %10 = arith.select %7, %5, %9 : vector<128x128xi1>, vector<128x128xf32>
    %c0_7 = arith.constant 0 : index
    %c0_8 = arith.constant 0 : index
    %11 = vector.load %arg4[%c0_7, %c0_8] : memref<1x128xf32, #tpu.memory_space<vmem>>, vector<1x128xf32>
    %12 = vector.broadcast %11 : vector<1x128xf32> to vector<128x128xf32>
    %13 = arith.mulf %10, %12 : vector<128x128xf32>
    %cst_9 = arith.constant dense<0.000000e+00> : vector<128xf32>
    %14 = vector.multi_reduction <add>, %13, %cst_9 [1] : vector<128x128xf32> to vector<128xf32>
    %15 = vector.shape_cast %14 : vector<128xf32> to vector<128x1xf32>
    %c0_10 = arith.constant 0 : index
    %16 = memref.load %arg5[%c0_10] : memref<1xf32, #tpu.memory_space<smem>>
    %17 = vector.broadcast %16 : f32 to vector<128x1xf32>
    %18 = arith.addf %15, %17 : vector<128x1xf32>
    %19 = vector.shape_cast %18 : vector<128x1xf32> to vector<128x1xf32>
    %20 = vector.broadcast %19 : vector<128x1xf32> to vector<128x128xf32>
    %c0_11 = arith.constant 0 : index
    %c0_12 = arith.constant 0 : index
    %21 = vector.load %arg6[%c0_11, %c0_12] : memref<128x128xf32, #tpu.memory_space<vmem>>, vector<128x128xf32>
    tpu.vector_store %arg6[%c0_11, %c0_12], %20 {strides = array<i32>} : memref<128x128xf32, #tpu.memory_space<vmem>>, vector<128x128xf32>,
    return
  }
  func.func @transform_0(%arg0: i32) -> (i32, i32) {
    %c0_i32 = arith.constant 0 : i32
    %c0_i32_0 = arith.constant 0 : i32
    return %arg0, %c0_i32 : i32, i32
  }
  func.func @transform_1(%arg0: i32) -> (i32, i32) {
    %c0_i32 = arith.constant 0 : i32
    %c0_i32_0 = arith.constant 0 : i32
    %c0_i32_1 = arith.constant 0 : i32
    return %c0_i32, %c0_i32_0 : i32, i32
  }
  func.func @transform_2(%arg0: i32) -> (i32, i32) {
    %c0_i32 = arith.constant 0 : i32
    %c0_i32_0 = arith.constant 0 : i32
    %c0_i32_1 = arith.constant 0 : i32
    return %c0_i32, %c0_i32_0 : i32, i32
  }
  func.func @transform_3(%arg0: i32) -> (i32, i32) {
    %c0_i32 = arith.constant 0 : i32
    %c0_i32_0 = arith.constant 0 : i32
    %c0_i32_1 = arith.constant 0 : i32
    return %c0_i32, %c0_i32_0 : i32, i32
  }
  func.func @transform_4(%arg0: i32) -> i32 {
    %c0_i32 = arith.constant 0 : i32
    %c0_i32_0 = arith.constant 0 : i32
    return %c0_i32 : i32
  }
  func.func @transform_5(%arg0: i32) -> (i32, i32) {
    %c0_i32 = arith.constant 0 : i32
    %c0_i32_0 = arith.constant 0 : i32
    return %arg0, %c0_i32 : i32, i32
  }
}

</mosaic_0001>

<llo_original>
// kernel: lightgcn_forward.3
$region0: #{lightgcn_forward.3}
  #allocation0 [shape = 'u32[]', space=smem, size = 0x4, offset = 0x4, fixed_abs, tag = 'smem constant byte address 0x4 - core index']
  #allocation1 [shape = 'u32[144,128]{1,0:T(1,128)}', space=vmem, size = 0x12000, scoped, tag = 'internal scratch']
  #allocation2 [shape = 'f32[1]{0:T(128)S(6)}', space=smem, size = 0x200, scoped, tag = 'scoped memory for lightgcn_forward.3']
  %s0 = inlined_call_operand.vmem [shape: bf16[128,256], index: 0, kind: input, shape index: {}]
  %s1 = inlined_call_operand.vmem [shape: bf16[256,128], index: 1, kind: input, shape index: {}]
  %s2 = inlined_call_operand.vmem [shape: f32[1,128], index: 2, kind: input, shape index: {}]
  %s3 = inlined_call_operand.vmem [shape: f32[1,128], index: 3, kind: input, shape index: {}]
  %s4 = inlined_call_operand.<no memory space> [shape: f32[1], index: 4, kind: input, shape index: {}]
  %s5 = inlined_call_operand.vmem [shape: f32[128,128], index: 5, kind: output, shape index: {}]
  %s6 = sld [smem:[#allocation0]]
  $region30: #{lightgcn_forward.3} parent=0
    _
  %s8 = ssub.s32 1, %s6
  %s9 = scalar_select 0, %s8, %s6
  %10 = sst [smem:[#allocation2]] %s4
  // Predicated region
  $region2: #{lightgcn_forward.3} parent=0 // pred_check
    _
  $region3: #{lightgcn_forward.3} parent=0 // pred_check_branch
    %12 = sbr.rel (0) target = $region5
  $region4: #{lightgcn_forward.3} parent=0 // pred_region
    _
  $region5: #{lightgcn_forward.3} parent=0 // pred_fallthru
    _
  // Predicated region
  $region6: #{lightgcn_forward.3} parent=0 // pred_check
    _
  $region7: #{lightgcn_forward.3} parent=0 // pred_check_branch
    %14 = sbr.rel (0) target = $region9
  $region8: #{lightgcn_forward.3} parent=0 // pred_region
    _
  $region9: #{lightgcn_forward.3} parent=0 // pred_fallthru
    _
  // Predicated region
  $region10: #{lightgcn_forward.3} parent=0 // pred_check
    _
  $region11: #{lightgcn_forward.3} parent=0 // pred_check_branch
    %16 = sbr.rel (0) target = $region13
  $region12: #{lightgcn_forward.3} parent=0 // pred_region
    _
  $region13: #{lightgcn_forward.3} parent=0 // pred_fallthru
    _
  // Predicated region
  $region14: #{lightgcn_forward.3} parent=0 // pred_check
    _
  $region15: #{lightgcn_forward.3} parent=0 // pred_check_branch
    %18 = sbr.rel (0) target = $region17
  $region16: #{lightgcn_forward.3} parent=0 // pred_region
    _
  $region17: #{lightgcn_forward.3} parent=0 // pred_fallthru
    _
  // Predicated region
  $region18: #{lightgcn_forward.3} parent=0 // pred_check
    _
  $region19: #{lightgcn_forward.3} parent=0 // pred_check_branch
    %20 = sbr.rel (0) target = $region21
  $region20: #{lightgcn_forward.3} parent=0 // pred_region
    _
  $region21: #{lightgcn_forward.3} parent=0 // pred_fallthru
    _
  %v22 = vld [vmem:[%s0] sm:$0xff]
  %v23 = vld [vmem:[%s0 + $0x8] sm:$0xff]
  %v24 = vld [vmem:[%s0 + $0x10] sm:$0xff]
  %v25 = vld [vmem:[%s0 + $0x18] sm:$0xff]
  %v26 = vld [vmem:[%s0 + $0x20] sm:$0xff]
  %v27 = vld [vmem:[%s0 + $0x28] sm:$0xff]
  %v28 = vld [vmem:[%s0 + $0x30] sm:$0xff]
  %v29 = vld [vmem:[%s0 + $0x38] sm:$0xff]
  %v30 = vld [vmem:[%s0 + $0x40] sm:$0xff]
  %v31 = vld [vmem:[%s0 + $0x48] sm:$0xff]
  %v32 = vld [vmem:[%s0 + $0x50] sm:$0xff]
  %v33 = vld [vmem:[%s0 + $0x58] sm:$0xff]
  %v34 = vld [vmem:[%s0 + $0x60] sm:$0xff]
  %v35 = vld [vmem:[%s0 + $0x68] sm:$0xff]
  %v36 = vld [vmem:[%s0 + $0x70] sm:$0xff]
  %v37 = vld [vmem:[%s0 + $0x78] sm:$0xff]
  %v38 = vld [vmem:[%s1] sm:$0xf]
  %v39 = vld [vmem:[%s1 + $0x4] sm:$0xf]
  %v40 = vld [vmem:[%s1 + $0x8] sm:$0xf]
  %v41 = vld [vmem:[%s1 + $0xc] sm:$0xf]
  %v42 = vld [vmem:[%s1 + $0x10] sm:$0xf]
  %v43 = vld [vmem:[%s1 + $0x14] sm:$0xf]
  %v44 = vld [vmem:[%s1 + $0x18] sm:$0xf]
  %v45 = vld [vmem:[%s1 + $0x1c] sm:$0xf]
  %v46 = vld [vmem:[%s1 + $0x20] sm:$0xf]
  %v47 = vld [vmem:[%s1 + $0x24] sm:$0xf]
  %v48 = vld [vmem:[%s1 + $0x28] sm:$0xf]
  %v49 = vld [vmem:[%s1 + $0x2c] sm:$0xf]
  %v50 = vld [vmem:[%s1 + $0x30] sm:$0xf]
  %v51 = vld [vmem:[%s1 + $0x34] sm:$0xf]
  %v52 = vld [vmem:[%s1 + $0x38] sm:$0xf]
  %v53 = vld [vmem:[%s1 + $0x3c] sm:$0xf]
  %v54 = vld [vmem:[%s1 + $0x40] sm:$0xf]
  %v55 = vld [vmem:[%s1 + $0x44] sm:$0xf]
  %v56 = vld [vmem:[%s1 + $0x48] sm:$0xf]
  %v57 = vld [vmem:[%s1 + $0x4c] sm:$0xf]
  %v58 = vld [vmem:[%s1 + $0x50] sm:$0xf]
  %v59 = vld [vmem:[%s1 + $0x54] sm:$0xf]
  %v60 = vld [vmem:[%s1 + $0x58] sm:$0xf]
  %v61 = vld [vmem:[%s1 + $0x5c] sm:$0xf]
  %v62 = vld [vmem:[%s1 + $0x60] sm:$0xf]
  %v63 = vld [vmem:[%s1 + $0x64] sm:$0xf]
  %v64 = vld [vmem:[%s1 + $0x68] sm:$0xf]
  %v65 = vld [vmem:[%s1 + $0x6c] sm:$0xf]
  %v66 = vld [vmem:[%s1 + $0x70] sm:$0xf]
  %v67 = vld [vmem:[%s1 + $0x74] sm:$0xf]
  %v68 = vld [vmem:[%s1 + $0x78] sm:$0xf]
  %v69 = vld [vmem:[%s1 + $0x7c] sm:$0xf]
  %v70 = vld [vmem:[%s2] sm:$0x1]
  %v72 = vlaneseq
  %v73 = vshrl.u32 %v72, 7
  %v74 = vsub.s32 0, %v73
  %v75 = vrot.slane %v70, %v74
  %v93 = vunpack.c.l.b16 %v22
  %v94 = vunpack.c.h.b16 %v22
  %v95 = vunpack.c.l.b16 %v23
  %v96 = vunpack.c.h.b16 %v23
  %v97 = vunpack.c.l.b16 %v24
  %v98 = vunpack.c.h.b16 %v24
  %v99 = vunpack.c.l.b16 %v25
  %v100 = vunpack.c.h.b16 %v25
  %v101 = vunpack.c.l.b16 %v26
  %v102 = vunpack.c.h.b16 %v26
  %v103 = vunpack.c.l.b16 %v27
  %v104 = vunpack.c.h.b16 %v27
  %v105 = vunpack.c.l.b16 %v28
  %v106 = vunpack.c.h.b16 %v28
  %v107 = vunpack.c.l.b16 %v29
  %v108 = vunpack.c.h.b16 %v29
  %v109 = vunpack.c.l.b16 %v30
  %v110 = vunpack.c.h.b16 %v30
  %v111 = vunpack.c.l.b16 %v31
  %v112 = vunpack.c.h.b16 %v31
  %v113 = vunpack.c.l.b16 %v32
  %v114 = vunpack.c.h.b16 %v32
  %v115 = vunpack.c.l.b16 %v33
  %v116 = vunpack.c.h.b16 %v33
  %v117 = vunpack.c.l.b16 %v34
  %v118 = vunpack.c.h.b16 %v34
  %v119 = vunpack.c.l.b16 %v35
  %v120 = vunpack.c.h.b16 %v35
  %v121 = vunpack.c.l.b16 %v36
  %v122 = vunpack.c.h.b16 %v36
  %v123 = vunpack.c.l.b16 %v37
  %v124 = vunpack.c.h.b16 %v37
  %v125 = vpack.c.b16 %v95, %v93
  %v126 = vpack.c.b16 %v96, %v94
  %v127 = vpack.c.b16 %v99, %v97
  %v128 = vpack.c.b16 %v100, %v98
  %v129 = vpack.c.b16 %v103, %v101
  %v130 = vpack.c.b16 %v104, %v102
  %v131 = vpack.c.b16 %v107, %v105
  %v132 = vpack.c.b16 %v108, %v106
  %v133 = vpack.c.b16 %v111, %v109
  %v134 = vpack.c.b16 %v112, %v110
  %v135 = vpack.c.b16 %v115, %v113
  %v136 = vpack.c.b16 %v116, %v114
  %v137 = vpack.c.b16 %v119, %v117
  %v138 = vpack.c.b16 %v120, %v118
  %v139 = vpack.c.b16 %v123, %v121
  %v140 = vpack.c.b16 %v124, %v122
  %v189 = vunpack.c.l.b16 %v38
  %v190 = vunpack.c.l.b16 %v39
  %v191 = vunpack.c.l.b16 %v40
  %v192 = vunpack.c.l.b16 %v41
  %v193 = vunpack.c.l.b16 %v42
  %v194 = vunpack.c.l.b16 %v43
  %v195 = vunpack.c.l.b16 %v44
  %v196 = vunpack.c.l.b16 %v45
  %v197 = vunpack.c.l.b16 %v46
  %v198 = vunpack.c.l.b16 %v47
  %v199 = vunpack.c.l.b16 %v48
  %v200 = vunpack.c.l.b16 %v49
  %v201 = vunpack.c.l.b16 %v50
  %v202 = vunpack.c.l.b16 %v51
  %v203 = vunpack.c.l.b16 %v52
  %v204 = vunpack.c.l.b16 %v53
  %v205 = vunpack.c.l.b16 %v54
  %v206 = vunpack.c.l.b16 %v55
  %v207 = vunpack.c.l.b16 %v56
  %v208 = vunpack.c.l.b16 %v57
  %v209 = vunpack.c.l.b16 %v58
  %v210 = vunpack.c.l.b16 %v59
  %v211 = vunpack.c.l.b16 %v60
  %v212 = vunpack.c.l.b16 %v61
  %v213 = vunpack.c.l.b16 %v62
  %v214 = vunpack.c.l.b16 %v63
  %v215 = vunpack.c.l.b16 %v64
  %v216 = vunpack.c.l.b16 %v65
  %v217 = vunpack.c.l.b16 %v66
  %v218 = vunpack.c.l.b16 %v67
  %v219 = vunpack.c.l.b16 %v68
  %v220 = vunpack.c.l.b16 %v69
  %v221 = vpack.c.b16 %v190, %v189
  %v222 = vpack.c.b16 %v192, %v191
  %v223 = vpack.c.b16 %v194, %v193
  %v224 = vpack.c.b16 %v196, %v195
  %v225 = vpack.c.b16 %v198, %v197
  %v226 = vpack.c.b16 %v200, %v199
  %v227 = vpack.c.b16 %v202, %v201
  %v228 = vpack.c.b16 %v204, %v203
  %v229 = vpack.c.b16 %v206, %v205
  %v230 = vpack.c.b16 %v208, %v207
  %v231 = vpack.c.b16 %v210, %v209
  %v232 = vpack.c.b16 %v212, %v211
  %v233 = vpack.c.b16 %v214, %v213
  %v234 = vpack.c.b16 %v216, %v215
  %v235 = vpack.c.b16 %v218, %v217
  %v236 = vpack.c.b16 %v220, %v219
  %253 = vmatprep.subr.bf16.mxu0 0
  %254 = vmatpush1.bf16.msra.mxu0 %v228
  %255 = vmatprep.subr.bf16.mxu0 0
  %256 = vmatpush1.bf16.msra.mxu0 %v227
  %257 = vmatprep.subr.bf16.mxu0 0
  %258 = vmatpush1.bf16.msra.mxu0 %v226
  %259 = vmatprep.subr.bf16.mxu0 0
  %260 = vmatpush1.bf16.msra.mxu0 %v225
  %261 = vmatprep.subr.bf16.mxu0 0
  %262 = vmatpush1.bf16.msra.mxu0 %v224
  %263 = vmatprep.subr.bf16.mxu0 0
  %264 = vmatpush1.bf16.msra.mxu0 %v223
  %265 = vmatprep.subr.bf16.mxu0 0
  %266 = vmatpush1.bf16.msra.mxu0 %v222
  %267 = vmatprep.subr.bf16.mxu0 0
  %268 = vmatpush1.bf16.msra.mxu0 %v221
  %269 = vmatprep.subr.bf16.mxu0 0
  %270 = vmatpush2.bf16.msra.mxu0 %v236
  %271 = vmatprep.subr.bf16.mxu0 0
  %272 = vmatpush2.bf16.msra.mxu0 %v235
  %273 = vmatprep.subr.bf16.mxu0 0
  %274 = vmatpush2.bf16.msra.mxu0 %v234
  %275 = vmatprep.subr.bf16.mxu0 0
  %276 = vmatpush2.bf16.msra.mxu0 %v233
  %277 = vmatprep.subr.bf16.mxu0 0
  %278 = vmatpush2.bf16.msra.mxu0 %v232
  %279 = vmatprep.subr.bf16.mxu0 0
  %280 = vmatpush2.bf16.msra.mxu0 %v231
  %281 = vmatprep.subr.bf16.mxu0 0
  %282 = vmatpush2.bf16.msra.mxu0 %v230
  %283 = vmatprep.subr.bf16.mxu0 0
  %284 = vmatpush2.bf16.msra.mxu0 %v229
  %285 = vmatprep.mubr.bf16.mxu0 %v126
  %286 = vmatmul.mubr.bf16.gmra.mxu0 %v125
  %v287 = vpop.f32.mrf.mxu0
  %v288 = vadd.f32 %v75, %v287
  %v289 = vpop.f32.mrf.mxu0
  %v290 = vpop.f32.mrf.mxu0
  %v291 = vadd.f32 %v75, %v290
  %v292 = vpop.f32.mrf.mxu0
  %293 = vmatprep.mubr.bf16.mxu0 %v128
  %294 = vmatmul.mubr.bf16.gmra.mxu0 %v127
  %v295 = vpop.f32.mrf.mxu0
  %v296 = vadd.f32 %v75, %v295
  %v297 = vpop.f32.mrf.mxu0
  %v298 = vpop.f32.mrf.mxu0
  %v299 = vadd.f32 %v75, %v298
  %v300 = vpop.f32.mrf.mxu0
  %301 = vmatprep.mubr.bf16.mxu0 %v130
  %302 = vmatmul.mubr.bf16.gmra.mxu0 %v129
  %v303 = vpop.f32.mrf.mxu0
  %v304 = vadd.f32 %v75, %v303
  %v305 = vpop.f32.mrf.mxu0
  %v306 = vpop.f32.mrf.mxu0
  %v307 = vadd.f32 %v75, %v306
  %v308 = vpop.f32.mrf.mxu0
  %309 = vmatprep.mubr.bf16.mxu0 %v132
  %310 = vmatmul.mubr.bf16.gmra.mxu0 %v131
  %v311 = vpop.f32.mrf.mxu0
  %v312 = vadd.f32 %v75, %v311
  %v313 = vpop.f32.mrf.mxu0
  %v314 = vpop.f32.mrf.mxu0
  %v315 = vadd.f32 %v75, %v314
  %v316 = vpop.f32.mrf.mxu0
  %317 = vmatprep.mubr.bf16.mxu0 %v134
  %318 = vmatmul.mubr.bf16.gmra.mxu0 %v133
  %v319 = vpop.f32.mrf.mxu0
  %v320 = vadd.f32 %v75, %v319
  %v321 = vpop.f32.mrf.mxu0
  %v322 = vpop.f32.mrf.mxu0
  %v323 = vadd.f32 %v75, %v322
  %v324 = vpop.f32.mrf.mxu0
  %325 = vmatprep.mubr.bf16.mxu0 %v136
  %326 = vmatmul.mubr.bf16.gmra.mxu0 %v135
  %v327 = vpop.f32.mrf.mxu0
  %v328 = vadd.f32 %v75, %v327
  %v329 = vpop.f32.mrf.mxu0
  %v330 = vpop.f32.mrf.mxu0
  %v331 = vadd.f32 %v75, %v330
  %v332 = vpop.f32.mrf.mxu0
  %333 = vmatprep.mubr.bf16.mxu0 %v138
  %334 = vmatmul.mubr.bf16.gmra.mxu0 %v137
  %v335 = vpop.f32.mrf.mxu0
  %v336 = vadd.f32 %v75, %v335
  %v337 = vpop.f32.mrf.mxu0
  %v338 = vpop.f32.mrf.mxu0
  %v339 = vadd.f32 %v75, %v338
  %v340 = vpop.f32.mrf.mxu0
  %341 = vmatprep.mubr.bf16.mxu0 %v140
  %342 = vmatmul.mubr.bf16.gmra.mxu0 %v139
  %v343 = vpop.f32.mrf.mxu0
  %v344 = vadd.f32 %v75, %v343
  %v345 = vpop.f32.mrf.mxu0
  %v346 = vpop.f32.mrf.mxu0
  %v347 = vadd.f32 %v75, %v346
  %v348 = vpop.f32.mrf.mxu0
  %349 = vdwg.mxu0
  %vm350 = vcmp.gt.f32.partialorder %v288, 0.0
  %vm351 = vcmp.gt.f32.partialorder %v291, 0.0
  %vm352 = vcmp.gt.f32.partialorder %v296, 0.0
  %vm353 = vcmp.gt.f32.partialorder %v299, 0.0
  %vm354 = vcmp.gt.f32.partialorder %v304, 0.0
  %vm355 = vcmp.gt.f32.partialorder %v307, 0.0
  %vm356 = vcmp.gt.f32.partialorder %v312, 0.0
  %vm357 = vcmp.gt.f32.partialorder %v315, 0.0
  %vm358 = vcmp.gt.f32.partialorder %v320, 0.0
  %vm359 = vcmp.gt.f32.partialorder %v323, 0.0
  %vm360 = vcmp.gt.f32.partialorder %v328, 0.0
  %vm361 = vcmp.gt.f32.partialorder %v331, 0.0
  %vm362 = vcmp.gt.f32.partialorder %v336, 0.0
  %vm363 = vcmp.gt.f32.partialorder %v339, 0.0
  %vm364 = vcmp.gt.f32.partialorder %v344, 0.0
  %vm365 = vcmp.gt.f32.partialorder %v347, 0.0
  %v366 = vmul.f32 %v288, 0.2
  %v367 = vmul.f32 %v291, 0.2
  %v368 = vmul.f32 %v296, 0.2
  %v369 = vmul.f32 %v299, 0.2
  %v370 = vmul.f32 %v304, 0.2
  %v371 = vmul.f32 %v307, 0.2
  %v372 = vmul.f32 %v312, 0.2
  %v373 = vmul.f32 %v315, 0.2
  %v374 = vmul.f32 %v320, 0.2
  %v375 = vmul.f32 %v323, 0.2
  %v376 = vmul.f32 %v328, 0.2
  %v377 = vmul.f32 %v331, 0.2
  %v378 = vmul.f32 %v336, 0.2
  %v379 = vmul.f32 %v339, 0.2
  %v380 = vmul.f32 %v344, 0.2
  %v381 = vmul.f32 %v347, 0.2
  %v382 = vsel %vm350, %v288, %v366
  %v383 = vsel %vm351, %v291, %v367
  %v384 = vsel %vm352, %v296, %v368
  %v385 = vsel %vm353, %v299, %v369
  %v386 = vsel %vm354, %v304, %v370
  %v387 = vsel %vm355, %v307, %v371
  %v388 = vsel %vm356, %v312, %v372
  %v389 = vsel %vm357, %v315, %v373
  %v390 = vsel %vm358, %v320, %v374
  %v391 = vsel %vm359, %v323, %v375
  %v392 = vsel %vm360, %v328, %v376
  %v393 = vsel %vm361, %v331, %v377
  %v394 = vsel %vm362, %v336, %v378
  %v395 = vsel %vm363, %v339, %v379
  %v396 = vsel %vm364, %v344, %v380
  %v397 = vsel %vm365, %v347, %v381
  %v398 = vld [vmem:[%s3] sm:$0x1]
  %v400 = vlaneseq
  %v401 = vshrl.u32 %v400, 7
  %v402 = vsub.s32 0, %v401
  %v403 = vrot.slane %v398, %v402
  %v405 = vmul.f32 %v382, %v403
  %v406 = vmul.f32 %v383, %v403
  %v407 = vmul.f32 %v384, %v403
  %v408 = vmul.f32 %v385, %v403
  %v409 = vmul.f32 %v386, %v403
  %v410 = vmul.f32 %v387, %v403
  %v411 = vmul.f32 %v388, %v403
  %v412 = vmul.f32 %v389, %v403
  %v413 = vmul.f32 %v390, %v403
  %v414 = vmul.f32 %v391, %v403
  %v415 = vmul.f32 %v392, %v403
  %v416 = vmul.f32 %v393, %v403
  %v417 = vmul.f32 %v394, %v403
  %v418 = vmul.f32 %v395, %v403
  %v419 = vmul.f32 %v396, %v403
  %v420 = vmul.f32 %v397, %v403
  %421 = vadd.xlane.f32.xlu0 %v405
  %v422 = vpop.xlane.xlu0 %421
  %423 = vadd.xlane.f32.xlu0 %v406
  %v424 = vpop.xlane.xlu0 %423
  %425 = vadd.xlane.f32.xlu0 %v407
  %v426 = vpop.xlane.xlu0 %425
  %427 = vadd.xlane.f32.xlu0 %v408
  %v428 = vpop.xlane.xlu0 %427
  %429 = vadd.xlane.f32.xlu0 %v409
  %v430 = vpop.xlane.xlu0 %429
  %431 = vadd.xlane.f32.xlu0 %v410
  %v432 = vpop.xlane.xlu0 %431
  %433 = vadd.xlane.f32.xlu0 %v411
  %v434 = vpop.xlane.xlu0 %433
  %435 = vadd.xlane.f32.xlu0 %v412
  %v436 = vpop.xlane.xlu0 %435
  %437 = vadd.xlane.f32.xlu0 %v413
  %v438 = vpop.xlane.xlu0 %437
  %439 = vadd.xlane.f32.xlu0 %v414
  %v440 = vpop.xlane.xlu0 %439
  %441 = vadd.xlane.f32.xlu0 %v415
  %v442 = vpop.xlane.xlu0 %441
  %443 = vadd.xlane.f32.xlu0 %v416
  %v444 = vpop.xlane.xlu0 %443
  %445 = vadd.xlane.f32.xlu0 %v417
  %v446 = vpop.xlane.xlu0 %445
  %447 = vadd.xlane.f32.xlu0 %v418
  %v448 = vpop.xlane.xlu0 %447
  %449 = vadd.xlane.f32.xlu0 %v419
  %v450 = vpop.xlane.xlu0 %449
  %451 = vadd.xlane.f32.xlu0 %v420
  %v452 = vpop.xlane.xlu0 %451
  %s453 = sld [smem:[#allocation2]]
  %v454 = vstv %s453
  %v455 = vadd.f32 %v422, %v454
  %v456 = vadd.f32 %v424, %v454
  %v457 = vadd.f32 %v426, %v454
  %v458 = vadd.f32 %v428, %v454
  %v459 = vadd.f32 %v430, %v454
  %v460 = vadd.f32 %v432, %v454
  %v461 = vadd.f32 %v434, %v454
  %v462 = vadd.f32 %v436, %v454
  %v463 = vadd.f32 %v438, %v454
  %v464 = vadd.f32 %v440, %v454
  %v465 = vadd.f32 %v442, %v454
  %v466 = vadd.f32 %v444, %v454
  %v467 = vadd.f32 %v446, %v454
  %v468 = vadd.f32 %v448, %v454
  %v469 = vadd.f32 %v450, %v454
  %v470 = vadd.f32 %v452, %v454
  %471 = vst [vmem:[%s5] sm:$0xff] %v455
  %472 = vst [vmem:[%s5 + $0x8] sm:$0xff] %v456
  %473 = vst [vmem:[%s5 + $0x10] sm:$0xff] %v457
  %474 = vst [vmem:[%s5 + $0x18] sm:$0xff] %v458
  %475 = vst [vmem:[%s5 + $0x20] sm:$0xff] %v459
  %476 = vst [vmem:[%s5 + $0x28] sm:$0xff] %v460
  %477 = vst [vmem:[%s5 + $0x30] sm:$0xff] %v461
  %478 = vst [vmem:[%s5 + $0x38] sm:$0xff] %v462
  %479 = vst [vmem:[%s5 + $0x40] sm:$0xff] %v463
  %480 = vst [vmem:[%s5 + $0x48] sm:$0xff] %v464
  %481 = vst [vmem:[%s5 + $0x50] sm:$0xff] %v465
  %482 = vst [vmem:[%s5 + $0x58] sm:$0xff] %v466
  %483 = vst [vmem:[%s5 + $0x60] sm:$0xff] %v467
  %484 = vst [vmem:[%s5 + $0x68] sm:$0xff] %v468
  %485 = vst [vmem:[%s5 + $0x70] sm:$0xff] %v469
  %486 = vst [vmem:[%s5 + $0x78] sm:$0xff] %v470
  // Predicated region
  $region22: #{lightgcn_forward.3} parent=0 // pred_check
    _
  $region23: #{lightgcn_forward.3} parent=0 // pred_check_branch
    %488 = sbr.rel (0) target = $region25
  $region24: #{lightgcn_forward.3} parent=0 // pred_region
    _
  $region25: #{lightgcn_forward.3} parent=0 // pred_fallthru
    _
  // Predicated region
  $region26: #{lightgcn_forward.3} parent=0 // pred_check
    _
  $region27: #{lightgcn_forward.3} parent=0 // pred_check_branch
    %490 = sbr.rel (0) target = $region29
  $region28: #{lightgcn_forward.3} parent=0 // pred_region
    _
  $region29: #{lightgcn_forward.3} parent=0 // pred_fallthru
    _

// kernel: lightgcn_forward.2
$region0: #{lightgcn_forward.2}
  #allocation0 [shape = 'u32[]', space=smem, size = 0x4, offset = 0x4, fixed_abs, tag = 'smem constant byte address 0x4 - core index']
  #allocation1 [shape = 'u32[144,128]{1,0:T(1,128)}', space=vmem, size = 0x12000, scoped, tag = 'internal scratch']
  #allocation2 [shape = 'f32[256,128]{1,0:T(8,128)}', space=vmem, size = 0x20000, scoped, tag = 'scratch operand']
  #allocation3 [shape = 'f32[256,128]{1,0:T(8,128)}', space=vmem, size = 0x20000, scoped, tag = 'scratch operand']
  %s0 = inlined_call_operand.vmem [shape: bf16[256,256], index: 0, kind: input, shape index: {}]
  %s1 = inlined_call_operand.vmem [shape: f32[256,1], index: 1, kind: input, shape index: {}]
  %s2 = inlined_call_operand.vmem [shape: f32[256,128], index: 2, kind: input, shape index: {}]
  %s3 = inlined_call_operand.vmem [shape: f32[256,128], index: 3, kind: output, shape index: {}]
  %s4 = sld [smem:[#allocation0]]
  $region22: #{lightgcn_forward.2} parent=0
    _
  %s6 = ssub.s32 1, %s4
  %s7 = scalar_select 0, %s6, %s4
  // Predicated region
  $region2: #{lightgcn_forward.2} parent=0 // pred_check
    _
  $region3: #{lightgcn_forward.2} parent=0 // pred_check_branch
    %9 = sbr.rel (0) target = $region5
  $region4: #{lightgcn_forward.2} parent=0 // pred_region
    _
  $region5: #{lightgcn_forward.2} parent=0 // pred_fallthru
    _
  // Predicated region
  $region6: #{lightgcn_forward.2} parent=0 // pred_check
    _
  $region7: #{lightgcn_forward.2} parent=0 // pred_check_branch
    %11 = sbr.rel (0) target = $region9
  $region8: #{lightgcn_forward.2} parent=0 // pred_region
    _
  $region9: #{lightgcn_forward.2} parent=0 // pred_fallthru
    _
  // Predicated region
  $region10: #{lightgcn_forward.2} parent=0 // pred_check
    _
  $region11: #{lightgcn_forward.2} parent=0 // pred_check_branch
    %13 = sbr.rel (0) target = $region13
  $region12: #{lightgcn_forward.2} parent=0 // pred_region
    _
  $region13: #{lightgcn_forward.2} parent=0 // pred_fallthru
    _
  %v15 = vld [vmem:[%s1] sm:$0xff]
  %v16 = vld [vmem:[%s1 + $0x8] sm:$0xff]
  %v17 = vld [vmem:[%s1 + $0x10] sm:$0xff]
  %v18 = vld [vmem:[%s1 + $0x18] sm:$0xff]
  %v19 = vld [vmem:[%s1 + $0x20] sm:$0xff]
  %v20 = vld [vmem:[%s1 + $0x28] sm:$0xff]
  %v21 = vld [vmem:[%s1 + $0x30] sm:$0xff]
  %v22 = vld [vmem:[%s1 + $0x38] sm:$0xff]
  %v23 = vld [vmem:[%s1 + $0x40] sm:$0xff]
  %v24 = vld [vmem:[%s1 + $0x48] sm:$0xff]
  %v25 = vld [vmem:[%s1 + $0x50] sm:$0xff]
  %v26 = vld [vmem:[%s1 + $0x58] sm:$0xff]
  %v27 = vld [vmem:[%s1 + $0x60] sm:$0xff]
  %v28 = vld [vmem:[%s1 + $0x68] sm:$0xff]
  %v29 = vld [vmem:[%s1 + $0x70] sm:$0xff]
  %v30 = vld [vmem:[%s1 + $0x78] sm:$0xff]
  %v31 = vld [vmem:[%s1 + $0x80] sm:$0xff]
  %v32 = vld [vmem:[%s1 + $0x88] sm:$0xff]
  %v33 = vld [vmem:[%s1 + $0x90] sm:$0xff]
  %v34 = vld [vmem:[%s1 + $0x98] sm:$0xff]
  %v35 = vld [vmem:[%s1 + $0xa0] sm:$0xff]
  %v36 = vld [vmem:[%s1 + $0xa8] sm:$0xff]
  %v37 = vld [vmem:[%s1 + $0xb0] sm:$0xff]
  %v38 = vld [vmem:[%s1 + $0xb8] sm:$0xff]
  %v39 = vld [vmem:[%s1 + $0xc0] sm:$0xff]
  %v40 = vld [vmem:[%s1 + $0xc8] sm:$0xff]
  %v41 = vld [vmem:[%s1 + $0xd0] sm:$0xff]
  %v42 = vld [vmem:[%s1 + $0xd8] sm:$0xff]
  %v43 = vld [vmem:[%s1 + $0xe0] sm:$0xff]
  %v44 = vld [vmem:[%s1 + $0xe8] sm:$0xff]
  %v45 = vld [vmem:[%s1 + $0xf0] sm:$0xff]
  %v46 = vld [vmem:[%s1 + $0xf8] sm:$0xff]
  %v47 = vld [vmem:[%s2] sm:$0xff]
  %v48 = vld [vmem:[%s2 + $0x8] sm:$0xff]
  %v49 = vld [vmem:[%s2 + $0x10] sm:$0xff]
  %v50 = vld [vmem:[%s2 + $0x18] sm:$0xff]
  %v51 = vld [vmem:[%s2 + $0x20] sm:$0xff]
  %v52 = vld [vmem:[%s2 + $0x28] sm:$0xff]
  %v53 = vld [vmem:[%s2 + $0x30] sm:$0xff]
  %v54 = vld [vmem:[%s2 + $0x38] sm:$0xff]
  %v55 = vld [vmem:[%s2 + $0x40] sm:$0xff]
  %v56 = vld [vmem:[%s2 + $0x48] sm:$0xff]
  %v57 = vld [vmem:[%s2 + $0x50] sm:$0xff]
  %v58 = vld [vmem:[%s2 + $0x58] sm:$0xff]
  %v59 = vld [vmem:[%s2 + $0x60] sm:$0xff]
  %v60 = vld [vmem:[%s2 + $0x68] sm:$0xff]
  %v61 = vld [vmem:[%s2 + $0x70] sm:$0xff]
  %v62 = vld [vmem:[%s2 + $0x78] sm:$0xff]
  %v63 = vld [vmem:[%s2 + $0x80] sm:$0xff]
  %v64 = vld [vmem:[%s2 + $0x88] sm:$0xff]
  %v65 = vld [vmem:[%s2 + $0x90] sm:$0xff]
  %v66 = vld [vmem:[%s2 + $0x98] sm:$0xff]
  %v67 = vld [vmem:[%s2 + $0xa0] sm:$0xff]
  %v68 = vld [vmem:[%s2 + $0xa8] sm:$0xff]
  %v69 = vld [vmem:[%s2 + $0xb0] sm:$0xff]
  %v70 = vld [vmem:[%s2 + $0xb8] sm:$0xff]
  %v71 = vld [vmem:[%s2 + $0xc0] sm:$0xff]
  %v72 = vld [vmem:[%s2 + $0xc8] sm:$0xff]
  %v73 = vld [vmem:[%s2 + $0xd0] sm:$0xff]
  %v74 = vld [vmem:[%s2 + $0xd8] sm:$0xff]
  %v75 = vld [vmem:[%s2 + $0xe0] sm:$0xff]
  %v76 = vld [vmem:[%s2 + $0xe8] sm:$0xff]
  %v77 = vld [vmem:[%s2 + $0xf0] sm:$0xff]
  %v78 = vld [vmem:[%s2 + $0xf8] sm:$0xff]
  %79 = vst [vmem:[#allocation2] sm:$0xff] %v47
  %80 = vst [vmem:[#allocation2 + $0x8] sm:$0xff] %v48
  %81 = vst [vmem:[#allocation2 + $0x10] sm:$0xff] %v49
  %82 = vst [vmem:[#allocation2 + $0x18] sm:$0xff] %v50
  %83 = vst [vmem:[#allocation2 + $0x20] sm:$0xff] %v51
  %84 = vst [vmem:[#allocation2 + $0x28] sm:$0xff] %v52
  %85 = vst [vmem:[#allocation2 + $0x30] sm:$0xff] %v53
  %86 = vst [vmem:[#allocation2 + $0x38] sm:$0xff] %v54
  %87 = vst [vmem:[#allocation2 + $0x40] sm:$0xff] %v55
  %88 = vst [vmem:[#allocation2 + $0x48] sm:$0xff] %v56
  %89 = vst [vmem:[#allocation2 + $0x50] sm:$0xff] %v57
  %90 = vst [vmem:[#allocation2 + $0x58] sm:$0xff] %v58
  %91 = vst [vmem:[#allocation2 + $0x60] sm:$0xff] %v59
  %92 = vst [vmem:[#allocation2 + $0x68] sm:$0xff] %v60
  %93 = vst [vmem:[#allocation2 + $0x70] sm:$0xff] %v61
  %94 = vst [vmem:[#allocation2 + $0x78] sm:$0xff] %v62
  %95 = vst [vmem:[#allocation2 + $0x80] sm:$0xff] %v63
  %96 = vst [vmem:[#allocation2 + $0x88] sm:$0xff] %v64
  %97 = vst [vmem:[#allocation2 + $0x90] sm:$0xff] %v65
  %98 = vst [vmem:[#allocation2 + $0x98] sm:$0xff] %v66
  %99 = vst [vmem:[#allocation2 + $0xa0] sm:$0xff] %v67
  %100 = vst [vmem:[#allocation2 + $0xa8] sm:$0xff] %v68
  %101 = vst [vmem:[#allocation2 + $0xb0] sm:$0xff] %v69
  %102 = vst [vmem:[#allocation2 + $0xb8] sm:$0xff] %v70
  %103 = vst [vmem:[#allocation2 + $0xc0] sm:$0xff] %v71
  %104 = vst [vmem:[#allocation2 + $0xc8] sm:$0xff] %v72
  %105 = vst [vmem:[#allocation2 + $0xd0] sm:$0xff] %v73
  %106 = vst [vmem:[#allocation2 + $0xd8] sm:$0xff] %v74
  %107 = vst [vmem:[#allocation2 + $0xe0] sm:$0xff] %v75
  %108 = vst [vmem:[#allocation2 + $0xe8] sm:$0xff] %v76
  %109 = vst [vmem:[#allocation2 + $0xf0] sm:$0xff] %v77
  %110 = vst [vmem:[#allocation2 + $0xf8] sm:$0xff] %v78
  %111 = vst [vmem:[#allocation3] sm:$0xff] %v47
  %112 = vst [vmem:[#allocation3 + $0x8] sm:$0xff] %v48
  %113 = vst [vmem:[#allocation3 + $0x10] sm:$0xff] %v49
  %114 = vst [vmem:[#allocation3 + $0x18] sm:$0xff] %v50
  %115 = vst [vmem:[#allocation3 + $0x20] sm:$0xff] %v51
  %116 = vst [vmem:[#allocation3 + $0x28] sm:$0xff] %v52
  %117 = vst [vmem:[#allocation3 + $0x30] sm:$0xff] %v53
  %118 = vst [vmem:[#allocation3 + $0x38] sm:$0xff] %v54
  %119 = vst [vmem:[#allocation3 + $0x40] sm:$0xff] %v55
  %120 = vst [vmem:[#allocation3 + $0x48] sm:$0xff] %v56
  %121 = vst [vmem:[#allocation3 + $0x50] sm:$0xff] %v57
  %122 = vst [vmem:[#allocation3 + $0x58] sm:$0xff] %v58
  %123 = vst [vmem:[#allocation3 + $0x60] sm:$0xff] %v59
  %124 = vst [vmem:[#allocation3 + $0x68] sm:$0xff] %v60
  %125 = vst [vmem:[#allocation3 + $0x70] sm:$0xff] %v61
  %126 = vst [vmem:[#allocation3 + $0x78] sm:$0xff] %v62
  %127 = vst [vmem:[#allocation3 + $0x80] sm:$0xff] %v63
  %128 = vst [vmem:[#allocation3 + $0x88] sm:$0xff] %v64
  %129 = vst [vmem:[#allocation3 + $0x90] sm:$0xff] %v65
  %130 = vst [vmem:[#allocation3 + $0x98] sm:$0xff] %v66
  %131 = vst [vmem:[#allocation3 + $0xa0] sm:$0xff] %v67
  %132 = vst [vmem:[#allocation3 + $0xa8] sm:$0xff] %v68
  %133 = vst [vmem:[#allocation3 + $0xb0] sm:$0xff] %v69
  %134 = vst [vmem:[#allocation3 + $0xb8] sm:$0xff] %v70
  %135 = vst [vmem:[#allocation3 + $0xc0] sm:$0xff] %v71
  %136 = vst [vmem:[#allocation3 + $0xc8] sm:$0xff] %v72
  %137 = vst [vmem:[#allocation3 + $0xd0] sm:$0xff] %v73
  %138 = vst [vmem:[#allocation3 + $0xd8] sm:$0xff] %v74
  %139 = vst [vmem:[#allocation3 + $0xe0] sm:$0xff] %v75
  %140 = vst [vmem:[#allocation3 + $0xe8] sm:$0xff] %v76
  %141 = vst [vmem:[#allocation3 + $0xf0] sm:$0xff] %v77
  %142 = vst [vmem:[#allocation3 + $0xf8] sm:$0xff] %v78
  %v143 = vld [vmem:[#allocation2] sm:$0xff]
  %v144 = vld [vmem:[#allocation2 + $0x8] sm:$0xff]
  %v145 = vld [vmem:[#allocation2 + $0x10] sm:$0xff]
  %v146 = vld [vmem:[#allocation2 + $0x18] sm:$0xff]
  %v147 = vld [vmem:[#allocation2 + $0x20] sm:$0xff]
  %v148 = vld [vmem:[#allocation2 + $0x28] sm:$0xff]
  %v149 = vld [vmem:[#allocation2 + $0x30] sm:$0xff]
  %v150 = vld [vmem:[#allocation2 + $0x38] sm:$0xff]
  %v151 = vld [vmem:[#allocation2 + $0x40] sm:$0xff]
  %v152 = vld [vmem:[#allocation2 + $0x48] sm:$0xff]
  %v153 = vld [vmem:[#allocation2 + $0x50] sm:$0xff]
  %v154 = vld [vmem:[#allocation2 + $0x58] sm:$0xff]
  %v155 = vld [vmem:[#allocation2 + $0x60] sm:$0xff]
  %v156 = vld [vmem:[#allocation2 + $0x68] sm:$0xff]
  %v157 = vld [vmem:[#allocation2 + $0x70] sm:$0xff]
  %v158 = vld [vmem:[#allocation2 + $0x78] sm:$0xff]
  %v159 = vld [vmem:[#allocation2 + $0x80] sm:$0xff]
  %v160 = vld [vmem:[#allocation2 + $0x88] sm:$0xff]
  %v161 = vld [vmem:[#allocation2 + $0x90] sm:$0xff]
  %v162 = vld [vmem:[#allocation2 + $0x98] sm:$0xff]
  %v163 = vld [vmem:[#allocation2 + $0xa0] sm:$0xff]
  %v164 = vld [vmem:[#allocation2 + $0xa8] sm:$0xff]
  %v165 = vld [vmem:[#allocation2 + $0xb0] sm:$0xff]
  %v166 = vld [vmem:[#allocation2 + $0xb8] sm:$0xff]
  %v167 = vld [vmem:[#allocation2 + $0xc0] sm:$0xff]
  %v168 = vld [vmem:[#allocation2 + $0xc8] sm:$0xff]
  %v169 = vld [vmem:[#allocation2 + $0xd0] sm:$0xff]
  %v170 = vld [vmem:[#allocation2 + $0xd8] sm:$0xff]
  %v171 = vld [vmem:[#allocation2 + $0xe0] sm:$0xff]
  %v172 = vld [vmem:[#allocation2 + $0xe8] sm:$0xff]
  %v173 = vld [vmem:[#allocation2 + $0xf0] sm:$0xff]
  %v174 = vld [vmem:[#allocation2 + $0xf8] sm:$0xff]
  %176 = vset.pattern.permute.xlu0 0
  %177 = vperm.xlu0 %176, %v15
  %v178 = vpop.permute.xlu0 %177
  %181 = vset.pattern.permute.xlu0 0
  %182 = vperm.xlu0 %181, %v16
  %v183 = vpop.permute.xlu0 %182
  %186 = vset.pattern.permute.xlu0 0
  %187 = vperm.xlu0 %186, %v17
  %v188 = vpop.permute.xlu0 %187
  %191 = vset.pattern.permute.xlu0 0
  %192 = vperm.xlu0 %191, %v18
  %v193 = vpop.permute.xlu0 %192
  %196 = vset.pattern.permute.xlu0 0
  %197 = vperm.xlu0 %196, %v19
  %v198 = vpop.permute.xlu0 %197
  %201 = vset.pattern.permute.xlu0 0
  %202 = vperm.xlu0 %201, %v20
  %v203 = vpop.permute.xlu0 %202
  %206 = vset.pattern.permute.xlu0 0
  %207 = vperm.xlu0 %206, %v21
  %v208 = vpop.permute.xlu0 %207
  %211 = vset.pattern.permute.xlu0 0
  %212 = vperm.xlu0 %211, %v22
  %v213 = vpop.permute.xlu0 %212
  %216 = vset.pattern.permute.xlu0 0
  %217 = vperm.xlu0 %216, %v23
  %v218 = vpop.permute.xlu0 %217
  %221 = vset.pattern.permute.xlu0 0
  %222 = vperm.xlu0 %221, %v24
  %v223 = vpop.permute.xlu0 %222
  %226 = vset.pattern.permute.xlu0 0
  %227 = vperm.xlu0 %226, %v25
  %v228 = vpop.permute.xlu0 %227
  %231 = vset.pattern.permute.xlu0 0
  %232 = vperm.xlu0 %231, %v26
  %v233 = vpop.permute.xlu0 %232
  %236 = vset.pattern.permute.xlu0 0
  %237 = vperm.xlu0 %236, %v27
  %v238 = vpop.permute.xlu0 %237
  %241 = vset.pattern.permute.xlu0 0
  %242 = vperm.xlu0 %241, %v28
  %v243 = vpop.permute.xlu0 %242
  %246 = vset.pattern.permute.xlu0 0
  %247 = vperm.xlu0 %246, %v29
  %v248 = vpop.permute.xlu0 %247
  %251 = vset.pattern.permute.xlu0 0
  %252 = vperm.xlu0 %251, %v30
  %v253 = vpop.permute.xlu0 %252
  %256 = vset.pattern.permute.xlu0 0
  %257 = vperm.xlu0 %256, %v31
  %v258 = vpop.permute.xlu0 %257
  %261 = vset.pattern.permute.xlu0 0
  %262 = vperm.xlu0 %261, %v32
  %v263 = vpop.permute.xlu0 %262
  %266 = vset.pattern.permute.xlu0 0
  %267 = vperm.xlu0 %266, %v33
  %v268 = vpop.permute.xlu0 %267
  %271 = vset.pattern.permute.xlu0 0
  %272 = vperm.xlu0 %271, %v34
  %v273 = vpop.permute.xlu0 %272
  %276 = vset.pattern.permute.xlu0 0
  %277 = vperm.xlu0 %276, %v35
  %v278 = vpop.permute.xlu0 %277
  %281 = vset.pattern.permute.xlu0 0
  %282 = vperm.xlu0 %281, %v36
  %v283 = vpop.permute.xlu0 %282
  %286 = vset.pattern.permute.xlu0 0
  %287 = vperm.xlu0 %286, %v37
  %v288 = vpop.permute.xlu0 %287
  %291 = vset.pattern.permute.xlu0 0
  %292 = vperm.xlu0 %291, %v38
  %v293 = vpop.permute.xlu0 %292
  %296 = vset.pattern.permute.xlu0 0
  %297 = vperm.xlu0 %296, %v39
  %v298 = vpop.permute.xlu0 %297
  %301 = vset.pattern.permute.xlu0 0
  %302 = vperm.xlu0 %301, %v40
  %v303 = vpop.permute.xlu0 %302
  %306 = vset.pattern.permute.xlu0 0
  %307 = vperm.xlu0 %306, %v41
  %v308 = vpop.permute.xlu0 %307
  %311 = vset.pattern.permute.xlu0 0
  %312 = vperm.xlu0 %311, %v42
  %v313 = vpop.permute.xlu0 %312
  %316 = vset.pattern.permute.xlu0 0
  %317 = vperm.xlu0 %316, %v43
  %v318 = vpop.permute.xlu0 %317
  %321 = vset.pattern.permute.xlu0 0
  %322 = vperm.xlu0 %321, %v44
  %v323 = vpop.permute.xlu0 %322
  %326 = vset.pattern.permute.xlu0 0
  %327 = vperm.xlu0 %326, %v45
  %v328 = vpop.permute.xlu0 %327
  %331 = vset.pattern.permute.xlu0 0
  %332 = vperm.xlu0 %331, %v46
  %v333 = vpop.permute.xlu0 %332
  %v335 = vmul.f32 %v178, %v143
  %v336 = vmul.f32 %v183, %v144
  %v337 = vmul.f32 %v188, %v145
  %v338 = vmul.f32 %v193, %v146
  %v339 = vmul.f32 %v198, %v147
  %v340 = vmul.f32 %v203, %v148
  %v341 = vmul.f32 %v208, %v149
  %v342 = vmul.f32 %v213, %v150
  %v343 = vmul.f32 %v218, %v151
  %v344 = vmul.f32 %v223, %v152
  %v345 = vmul.f32 %v228, %v153
  %v346 = vmul.f32 %v233, %v154
  %v347 = vmul.f32 %v238, %v155
  %v348 = vmul.f32 %v243, %v156
  %v349 = vmul.f32 %v248, %v157
  %v350 = vmul.f32 %v253, %v158
  %v351 = vmul.f32 %v258, %v159
  %v352 = vmul.f32 %v263, %v160
  %v353 = vmul.f32 %v268, %v161
  %v354 = vmul.f32 %v273, %v162
  %v355 = vmul.f32 %v278, %v163
  %v356 = vmul.f32 %v283, %v164
  %v357 = vmul.f32 %v288, %v165
  %v358 = vmul.f32 %v293, %v166
  %v359 = vmul.f32 %v298, %v167
  %v360 = vmul.f32 %v303, %v168
  %v361 = vmul.f32 %v308, %v169
  %v362 = vmul.f32 %v313, %v170
  %v363 = vmul.f32 %v318, %v171
  %v364 = vmul.f32 %v323, %v172
  %v365 = vmul.f32 %v328, %v173
  %v366 = vmul.f32 %v333, %v174
  %v367 = vpack.c.bf16 %v336, %v335
  %v368 = vpack.c.bf16 %v338, %v337
  %v369 = vpack.c.bf16 %v340, %v339
  %v370 = vpack.c.bf16 %v342, %v341
  %v371 = vpack.c.bf16 %v344, %v343
  %v372 = vpack.c.bf16 %v346, %v345
  %v373 = vpack.c.bf16 %v348, %v347
  %v374 = vpack.c.bf16 %v350, %v349
  %v375 = vpack.c.bf16 %v352, %v351
  %v376 = vpack.c.bf16 %v354, %v353
  %v377 = vpack.c.bf16 %v356, %v355
  %v378 = vpack.c.bf16 %v358, %v357
  %v379 = vpack.c.bf16 %v360, %v359
  %v380 = vpack.c.bf16 %v362, %v361
  %v381 = vpack.c.bf16 %v364, %v363
  %v382 = vpack.c.bf16 %v366, %v365
  %v383 = vld [vmem:[%s0] sm:$0xff]
  %v384 = vld [vmem:[%s0 + $0x8] sm:$0xff]
  %v385 = vld [vmem:[%s0 + $0x10] sm:$0xff]
  %v386 = vld [vmem:[%s0 + $0x18] sm:$0xff]
  %v387 = vld [vmem:[%s0 + $0x20] sm:$0xff]
  %v388 = vld [vmem:[%s0 + $0x28] sm:$0xff]
  %v389 = vld [vmem:[%s0 + $0x30] sm:$0xff]
  %v390 = vld [vmem:[%s0 + $0x38] sm:$0xff]
  %v391 = vld [vmem:[%s0 + $0x40] sm:$0xff]
  %v392 = vld [vmem:[%s0 + $0x48] sm:$0xff]
  %v393 = vld [vmem:[%s0 + $0x50] sm:$0xff]
  %v394 = vld [vmem:[%s0 + $0x58] sm:$0xff]
  %v395 = vld [vmem:[%s0 + $0x60] sm:$0xff]
  %v396 = vld [vmem:[%s0 + $0x68] sm:$0xff]
  %v397 = vld [vmem:[%s0 + $0x70] sm:$0xff]
  %v398 = vld [vmem:[%s0 + $0x78] sm:$0xff]
  %v399 = vld [vmem:[%s0 + $0x80] sm:$0xff]
  %v400 = vld [vmem:[%s0 + $0x88] sm:$0xff]
  %v401 = vld [vmem:[%s0 + $0x90] sm:$0xff]
  %v402 = vld [vmem:[%s0 + $0x98] sm:$0xff]
  %v403 = vld [vmem:[%s0 + $0xa0] sm:$0xff]
  %v404 = vld [vmem:[%s0 + $0xa8] sm:$0xff]
  %v405 = vld [vmem:[%s0 + $0xb0] sm:$0xff]
  %v406 = vld [vmem:[%s0 + $0xb8] sm:$0xff]
  %v407 = vld [vmem:[%s0 + $0xc0] sm:$0xff]
  %v408 = vld [vmem:[%s0 + $0xc8] sm:$0xff]
  %v409 = vld [vmem:[%s0 + $0xd0] sm:$0xff]
  %v410 = vld [vmem:[%s0 + $0xd8] sm:$0xff]
  %v411 = vld [vmem:[%s0 + $0xe0] sm:$0xff]
  %v412 = vld [vmem:[%s0 + $0xe8] sm:$0xff]
  %v413 = vld [vmem:[%s0 + $0xf0] sm:$0xff]
  %v414 = vld [vmem:[%s0 + $0xf8] sm:$0xff]
  %v447 = vunpack.c.l.b16 %v383
  %v448 = vunpack.c.h.b16 %v383
  %v449 = vunpack.c.l.b16 %v384
  %v450 = vunpack.c.h.b16 %v384
  %v451 = vunpack.c.l.b16 %v385
  %v452 = vunpack.c.h.b16 %v385
  %v453 = vunpack.c.l.b16 %v386
  %v454 = vunpack.c.h.b16 %v386
  %v455 = vunpack.c.l.b16 %v387
  %v456 = vunpack.c.h.b16 %v387
  %v457 = vunpack.c.l.b16 %v388
  %v458 = vunpack.c.h.b16 %v388
  %v459 = vunpack.c.l.b16 %v389
  %v460 = vunpack.c.h.b16 %v389
  %v461 = vunpack.c.l.b16 %v390
  %v462 = vunpack.c.h.b16 %v390
  %v463 = vunpack.c.l.b16 %v391
  %v464 = vunpack.c.h.b16 %v391
  %v465 = vunpack.c.l.b16 %v392
  %v466 = vunpack.c.h.b16 %v392
  %v467 = vunpack.c.l.b16 %v393
  %v468 = vunpack.c.h.b16 %v393
  %v469 = vunpack.c.l.b16 %v394
  %v470 = vunpack.c.h.b16 %v394
  %v471 = vunpack.c.l.b16 %v395
  %v472 = vunpack.c.h.b16 %v395
  %v473 = vunpack.c.l.b16 %v396
  %v474 = vunpack.c.h.b16 %v396
  %v475 = vunpack.c.l.b16 %v397
  %v476 = vunpack.c.h.b16 %v397
  %v477 = vunpack.c.l.b16 %v398
  %v478 = vunpack.c.h.b16 %v398
  %v479 = vunpack.c.l.b16 %v399
  %v480 = vunpack.c.h.b16 %v399
  %v481 = vunpack.c.l.b16 %v400
  %v482 = vunpack.c.h.b16 %v400
  %v483 = vunpack.c.l.b16 %v401
  %v484 = vunpack.c.h.b16 %v401
  %v485 = vunpack.c.l.b16 %v402
  %v486 = vunpack.c.h.b16 %v402
  %v487 = vunpack.c.l.b16 %v403
  %v488 = vunpack.c.h.b16 %v403
  %v489 = vunpack.c.l.b16 %v404
  %v490 = vunpack.c.h.b16 %v404
  %v491 = vunpack.c.l.b16 %v405
  %v492 = vunpack.c.h.b16 %v405
  %v493 = vunpack.c.l.b16 %v406
  %v494 = vunpack.c.h.b16 %v406
  %v495 = vunpack.c.l.b16 %v407
  %v496 = vunpack.c.h.b16 %v407
  %v497 = vunpack.c.l.b16 %v408
  %v498 = vunpack.c.h.b16 %v408
  %v499 = vunpack.c.l.b16 %v409
  %v500 = vunpack.c.h.b16 %v409
  %v501 = vunpack.c.l.b16 %v410
  %v502 = vunpack.c.h.b16 %v410
  %v503 = vunpack.c.l.b16 %v411
  %v504 = vunpack.c.h.b16 %v411
  %v505 = vunpack.c.l.b16 %v412
  %v506 = vunpack.c.h.b16 %v412
  %v507 = vunpack.c.l.b16 %v413
  %v508 = vunpack.c.h.b16 %v413
  %v509 = vunpack.c.l.b16 %v414
  %v510 = vunpack.c.h.b16 %v414
  %v511 = vpack.c.b16 %v449, %v447
  %v512 = vpack.c.b16 %v450, %v448
  %v513 = vpack.c.b16 %v453, %v451
  %v514 = vpack.c.b16 %v454, %v452
  %v515 = vpack.c.b16 %v457, %v455
  %v516 = vpack.c.b16 %v458, %v456
  %v517 = vpack.c.b16 %v461, %v459
  %v518 = vpack.c.b16 %v462, %v460
  %v519 = vpack.c.b16 %v465, %v463
  %v520 = vpack.c.b16 %v466, %v464
  %v521 = vpack.c.b16 %v469, %v467
  %v522 = vpack.c.b16 %v470, %v468
  %v523 = vpack.c.b16 %v473, %v471
  %v524 = vpack.c.b16 %v474, %v472
  %v525 = vpack.c.b16 %v477, %v475
  %v526 = vpack.c.b16 %v478, %v476
  %v527 = vpack.c.b16 %v481, %v479
  %v528 = vpack.c.b16 %v482, %v480
  %v529 = vpack.c.b16 %v485, %v483
  %v530 = vpack.c.b16 %v486, %v484
  %v531 = vpack.c.b16 %v489, %v487
  %v532 = vpack.c.b16 %v490, %v488
  %v533 = vpack.c.b16 %v493, %v491
  %v534 = vpack.c.b16 %v494, %v492
  %v535 = vpack.c.b16 %v497, %v495
  %v536 = vpack.c.b16 %v498, %v496
  %v537 = vpack.c.b16 %v501, %v499
  %v538 = vpack.c.b16 %v502, %v500
  %v539 = vpack.c.b16 %v505, %v503
  %v540 = vpack.c.b16 %v506, %v504
  %v541 = vpack.c.b16 %v509, %v507
  %v542 = vpack.c.b16 %v510, %v508
  %575 = vmatprep.subr.bf16.mxu0 0
  %576 = vmatpush1.bf16.msra.mxu0 %v374
  %577 = vmatprep.subr.bf16.mxu0 0
  %578 = vmatpush1.bf16.msra.mxu0 %v373
  %579 = vmatprep.subr.bf16.mxu0 0
  %580 = vmatpush1.bf16.msra.mxu0 %v372
  %581 = vmatprep.subr.bf16.mxu0 0
  %582 = vmatpush1.bf16.msra.mxu0 %v371
  %583 = vmatprep.subr.bf16.mxu0 0
  %584 = vmatpush1.bf16.msra.mxu0 %v370
  %585 = vmatprep.subr.bf16.mxu0 0
  %586 = vmatpush1.bf16.msra.mxu0 %v369
  %587 = vmatprep.subr.bf16.mxu0 0
  %588 = vmatpush1.bf16.msra.mxu0 %v368
  %589 = vmatprep.subr.bf16.mxu0 0
  %590 = vmatpush1.bf16.msra.mxu0 %v367
  %591 = vmatprep.subr.bf16.mxu0 0
  %592 = vmatpush2.bf16.msra.mxu0 %v382
  %593 = vmatprep.subr.bf16.mxu0 0
  %594 = vmatpush2.bf16.msra.mxu0 %v381
  %595 = vmatprep.subr.bf16.mxu0 0
  %596 = vmatpush2.bf16.msra.mxu0 %v380
  %597 = vmatprep.subr.bf16.mxu0 0
  %598 = vmatpush2.bf16.msra.mxu0 %v379
  %599 = vmatprep.subr.bf16.mxu0 0
  %600 = vmatpush2.bf16.msra.mxu0 %v378
  %601 = vmatprep.subr.bf16.mxu0 0
  %602 = vmatpush2.bf16.msra.mxu0 %v377
  %603 = vmatprep.subr.bf16.mxu0 0
  %604 = vmatpush2.bf16.msra.mxu0 %v376
  %605 = vmatprep.subr.bf16.mxu0 0
  %606 = vmatpush2.bf16.msra.mxu0 %v375
  %607 = vmatprep.mubr.bf16.mxu0 %v512
  %608 = vmatmul.mubr.bf16.gmra.mxu0 %v511
  %v609 = vpop.f32.mrf.mxu0
  %v610 = vadd.f32 0.0, %v609
  %v611 = vpop.f32.mrf.mxu0
  %v612 = vpop.f32.mrf.mxu0
  %v613 = vadd.f32 0.0, %v612
  %v614 = vpop.f32.mrf.mxu0
  %615 = vmatprep.mubr.bf16.mxu0 %v514
  %616 = vmatmul.mubr.bf16.gmra.mxu0 %v513
  %v617 = vpop.f32.mrf.mxu0
  %v618 = vadd.f32 0.0, %v617
  %v619 = vpop.f32.mrf.mxu0
  %v620 = vpop.f32.mrf.mxu0
  %v621 = vadd.f32 0.0, %v620
  %v622 = vpop.f32.mrf.mxu0
  %623 = vmatprep.mubr.bf16.mxu0 %v516
  %624 = vmatmul.mubr.bf16.gmra.mxu0 %v515
  %v625 = vpop.f32.mrf.mxu0
  %v626 = vadd.f32 0.0, %v625
  %v627 = vpop.f32.mrf.mxu0
  %v628 = vpop.f32.mrf.mxu0
  %v629 = vadd.f32 0.0, %v628
  %v630 = vpop.f32.mrf.mxu0
  %631 = vmatprep.mubr.bf16.mxu0 %v518
  %632 = vmatmul.mubr.bf16.gmra.mxu0 %v517
  %v633 = vpop.f32.mrf.mxu0
  %v634 = vadd.f32 0.0, %v633
  %v635 = vpop.f32.mrf.mxu0
  %v636 = vpop.f32.mrf.mxu0
  %v637 = vadd.f32 0.0, %v636
  %v638 = vpop.f32.mrf.mxu0
  %639 = vmatprep.mubr.bf16.mxu0 %v520
  %640 = vmatmul.mubr.bf16.gmra.mxu0 %v519
  %v641 = vpop.f32.mrf.mxu0
  %v642 = vadd.f32 0.0, %v641
  %v643 = vpop.f32.mrf.mxu0
  %v644 = vpop.f32.mrf.mxu0
  %v645 = vadd.f32 0.0, %v644
  %v646 = vpop.f32.mrf.mxu0
  %647 = vmatprep.mubr.bf16.mxu0 %v522
  %648 = vmatmul.mubr.bf16.gmra.mxu0 %v521
  %v649 = vpop.f32.mrf.mxu0
  %v650 = vadd.f32 0.0, %v649
  %v651 = vpop.f32.mrf.mxu0
  %v652 = vpop.f32.mrf.mxu0
  %v653 = vadd.f32 0.0, %v652
  %v654 = vpop.f32.mrf.mxu0
  %655 = vmatprep.mubr.bf16.mxu0 %v524
  %656 = vmatmul.mubr.bf16.gmra.mxu0 %v523
  %v657 = vpop.f32.mrf.mxu0
  %v658 = vadd.f32 0.0, %v657
  %v659 = vpop.f32.mrf.mxu0
  %v660 = vpop.f32.mrf.mxu0
  %v661 = vadd.f32 0.0, %v660
  %v662 = vpop.f32.mrf.mxu0
  %663 = vmatprep.mubr.bf16.mxu0 %v526
  %664 = vmatmul.mubr.bf16.gmra.mxu0 %v525
  %v665 = vpop.f32.mrf.mxu0
  %v666 = vadd.f32 0.0, %v665
  %v667 = vpop.f32.mrf.mxu0
  %v668 = vpop.f32.mrf.mxu0
  %v669 = vadd.f32 0.0, %v668
  %v670 = vpop.f32.mrf.mxu0
  %671 = vmatprep.mubr.bf16.mxu0 %v528
  %672 = vmatmul.mubr.bf16.gmra.mxu0 %v527
  %v673 = vpop.f32.mrf.mxu0
  %v674 = vadd.f32 0.0, %v673
  %v675 = vpop.f32.mrf.mxu0
  %v676 = vpop.f32.mrf.mxu0
  %v677 = vadd.f32 0.0, %v676
  %v678 = vpop.f32.mrf.mxu0
  %679 = vmatprep.mubr.bf16.mxu0 %v530
  %680 = vmatmul.mubr.bf16.gmra.mxu0 %v529
  %v681 = vpop.f32.mrf.mxu0
  %v682 = vadd.f32 0.0, %v681
  %v683 = vpop.f32.mrf.mxu0
  %v684 = vpop.f32.mrf.mxu0
  %v685 = vadd.f32 0.0, %v684
  %v686 = vpop.f32.mrf.mxu0
  %687 = vmatprep.mubr.bf16.mxu0 %v532
  %688 = vmatmul.mubr.bf16.gmra.mxu0 %v531
  %v689 = vpop.f32.mrf.mxu0
  %v690 = vadd.f32 0.0, %v689
  %v691 = vpop.f32.mrf.mxu0
  %v692 = vpop.f32.mrf.mxu0
  %v693 = vadd.f32 0.0, %v692
  %v694 = vpop.f32.mrf.mxu0
  %695 = vmatprep.mubr.bf16.mxu0 %v534
  %696 = vmatmul.mubr.bf16.gmra.mxu0 %v533
  %v697 = vpop.f32.mrf.mxu0
  %v698 = vadd.f32 0.0, %v697
  %v699 = vpop.f32.mrf.mxu0
  %v700 = vpop.f32.mrf.mxu0
  %v701 = vadd.f32 0.0, %v700
  %v702 = vpop.f32.mrf.mxu0
  %703 = vmatprep.mubr.bf16.mxu0 %v536
  %704 = vmatmul.mubr.bf16.gmra.mxu0 %v535
  %v705 = vpop.f32.mrf.mxu0
  %v706 = vadd.f32 0.0, %v705
  %v707 = vpop.f32.mrf.mxu0
  %v708 = vpop.f32.mrf.mxu0
  %v709 = vadd.f32 0.0, %v708
  %v710 = vpop.f32.mrf.mxu0
  %711 = vmatprep.mubr.bf16.mxu0 %v538
  %712 = vmatmul.mubr.bf16.gmra.mxu0 %v537
  %v713 = vpop.f32.mrf.mxu0
  %v714 = vadd.f32 0.0, %v713
  %v715 = vpop.f32.mrf.mxu0
  %v716 = vpop.f32.mrf.mxu0
  %v717 = vadd.f32 0.0, %v716
  %v718 = vpop.f32.mrf.mxu0
  %719 = vmatprep.mubr.bf16.mxu0 %v540
  %720 = vmatmul.mubr.bf16.gmra.mxu0 %v539
  %v721 = vpop.f32.mrf.mxu0
  %v722 = vadd.f32 0.0, %v721
  %v723 = vpop.f32.mrf.mxu0
  %v724 = vpop.f32.mrf.mxu0
  %v725 = vadd.f32 0.0, %v724
  %v726 = vpop.f32.mrf.mxu0
  %727 = vmatprep.mubr.bf16.mxu0 %v542
  %728 = vmatmul.mubr.bf16.gmra.mxu0 %v541
  %v729 = vpop.f32.mrf.mxu0
  %v730 = vadd.f32 0.0, %v729
  %v731 = vpop.f32.mrf.mxu0
  %v732 = vpop.f32.mrf.mxu0
  %v733 = vadd.f32 0.0, %v732
  %v734 = vpop.f32.mrf.mxu0
  %735 = vdwg.mxu0
  %v736 = vmul.f32 %v178, %v610
  %v737 = vmul.f32 %v183, %v613
  %v738 = vmul.f32 %v188, %v618
  %v739 = vmul.f32 %v193, %v621
  %v740 = vmul.f32 %v198, %v626
  %v741 = vmul.f32 %v203, %v629
  %v742 = vmul.f32 %v208, %v634
  %v743 = vmul.f32 %v213, %v637
  %v744 = vmul.f32 %v218, %v642
  %v745 = vmul.f32 %v223, %v645
  %v746 = vmul.f32 %v228, %v650
  %v747 = vmul.f32 %v233, %v653
  %v748 = vmul.f32 %v238, %v658
  %v749 = vmul.f32 %v243, %v661
  %v750 = vmul.f32 %v248, %v666
  %v751 = vmul.f32 %v253, %v669
  %v752 = vmul.f32 %v258, %v674
  %v753 = vmul.f32 %v263, %v677
  %v754 = vmul.f32 %v268, %v682
  %v755 = vmul.f32 %v273, %v685
  %v756 = vmul.f32 %v278, %v690
  %v757 = vmul.f32 %v283, %v693
  %v758 = vmul.f32 %v288, %v698
  %v759 = vmul.f32 %v293, %v701
  %v760 = vmul.f32 %v298, %v706
  %v761 = vmul.f32 %v303, %v709
  %v762 = vmul.f32 %v308, %v714
  %v763 = vmul.f32 %v313, %v717
  %v764 = vmul.f32 %v318, %v722
  %v765 = vmul.f32 %v323, %v725
  %v766 = vmul.f32 %v328, %v730
  %v767 = vmul.f32 %v333, %v733
  %768 = vst [vmem:[#allocation2] sm:$0xff] %v736
  %769 = vst [vmem:[#allocation2 + $0x8] sm:$0xff] %v737
  %770 = vst [vmem:[#allocation2 + $0x10] sm:$0xff] %v738
  %771 = vst [vmem:[#allocation2 + $0x18] sm:$0xff] %v739
  %772 = vst [vmem:[#allocation2 + $0x20] sm:$0xff] %v740
  %773 = vst [vmem:[#allocation2 + $0x28] sm:$0xff] %v741
  %774 = vst [vmem:[#allocation2 + $0x30] sm:$0xff] %v742
  %775 = vst [vmem:[#allocation2 + $0x38] sm:$0xff] %v743
  %776 = vst [vmem:[#allocation2 + $0x40] sm:$0xff] %v744
  %777 = vst [vmem:[#allocation2 + $0x48] sm:$0xff] %v745
  %778 = vst [vmem:[#allocation2 + $0x50] sm:$0xff] %v746
  %779 = vst [vmem:[#allocation2 + $0x58] sm:$0xff] %v747
  %780 = vst [vmem:[#allocation2 + $0x60] sm:$0xff] %v748
  %781 = vst [vmem:[#allocation2 + $0x68] sm:$0xff] %v749
  %782 = vst [vmem:[#allocation2 + $0x70] sm:$0xff] %v750
  %783 = vst [vmem:[#allocation2 + $0x78] sm:$0xff] %v751
  %784 = vst [vmem:[#allocation2 + $0x80] sm:$0xff] %v752
  %785 = vst [vmem:[#allocation2 + $0x88] sm:$0xff] %v753
  %786 = vst [vmem:[#allocation2 + $0x90] sm:$0xff] %v754
  %787 = vst [vmem:[#allocation2 + $0x98] sm:$0xff] %v755
  %788 = vst [vmem:[#allocation2 + $0xa0] sm:$0xff] %v756
  %789 = vst [vmem:[#allocation2 + $0xa8] sm:$0xff] %v757
  %790 = vst [vmem:[#allocation2 + $0xb0] sm:$0xff] %v758
  %791 = vst [vmem:[#allocation2 + $0xb8] sm:$0xff] %v759
  %792 = vst [vmem:[#allocation2 + $0xc0] sm:$0xff] %v760
  %793 = vst [vmem:[#allocation2 + $0xc8] sm:$0xff] %v761
  %794 = vst [vmem:[#allocation2 + $0xd0] sm:$0xff] %v762
  %795 = vst [vmem:[#allocation2 + $0xd8] sm:$0xff] %v763
  %796 = vst [vmem:[#allocation2 + $0xe0] sm:$0xff] %v764
  %797 = vst [vmem:[#allocation2 + $0xe8] sm:$0xff] %v765
  %798 = vst [vmem:[#allocation2 + $0xf0] sm:$0xff] %v766
  %799 = vst [vmem:[#allocation2 + $0xf8] sm:$0xff] %v767
  %v800 = vld [vmem:[#allocation3] sm:$0xff]
  %v801 = vld [vmem:[#allocation3 + $0x8] sm:$0xff]
  %v802 = vld [vmem:[#allocation3 + $0x10] sm:$0xff]
  %v803 = vld [vmem:[#allocation3 + $0x18] sm:$0xff]
  %v804 = vld [vmem:[#allocation3 + $0x20] sm:$0xff]
  %v805 = vld [vmem:[#allocation3 + $0x28] sm:$0xff]
  %v806 = vld [vmem:[#allocation3 + $0x30] sm:$0xff]
  %v807 = vld [vmem:[#allocation3 + $0x38] sm:$0xff]
  %v808 = vld [vmem:[#allocation3 + $0x40] sm:$0xff]
  %v809 = vld [vmem:[#allocation3 + $0x48] sm:$0xff]
  %v810 = vld [vmem:[#allocation3 + $0x50] sm:$0xff]
  %v811 = vld [vmem:[#allocation3 + $0x58] sm:$0xff]
  %v812 = vld [vmem:[#allocation3 + $0x60] sm:$0xff]
  %v813 = vld [vmem:[#allocation3 + $0x68] sm:$0xff]
  %v814 = vld [vmem:[#allocation3 + $0x70] sm:$0xff]
  %v815 = vld [vmem:[#allocation3 + $0x78] sm:$0xff]
  %v816 = vld [vmem:[#allocation3 + $0x80] sm:$0xff]
  %v817 = vld [vmem:[#allocation3 + $0x88] sm:$0xff]
  %v818 = vld [vmem:[#allocation3 + $0x90] sm:$0xff]
  %v819 = vld [vmem:[#allocation3 + $0x98] sm:$0xff]
  %v820 = vld [vmem:[#allocation3 + $0xa0] sm:$0xff]
  %v821 = vld [vmem:[#allocation3 + $0xa8] sm:$0xff]
  %v822 = vld [vmem:[#allocation3 + $0xb0] sm:$0xff]
  %v823 = vld [vmem:[#allocation3 + $0xb8] sm:$0xff]
  %v824 = vld [vmem:[#allocation3 + $0xc0] sm:$0xff]
  %v825 = vld [vmem:[#allocation3 + $0xc8] sm:$0xff]
  %v826 = vld [vmem:[#allocation3 + $0xd0] sm:$0xff]
  %v827 = vld [vmem:[#allocation3 + $0xd8] sm:$0xff]
  %v828 = vld [vmem:[#allocation3 + $0xe0] sm:$0xff]
  %v829 = vld [vmem:[#allocation3 + $0xe8] sm:$0xff]
  %v830 = vld [vmem:[#allocation3 + $0xf0] sm:$0xff]
  %v831 = vld [vmem:[#allocation3 + $0xf8] sm:$0xff]
  %v832 = vadd.f32 %v800, %v736
  %v833 = vadd.f32 %v801, %v737
  %v834 = vadd.f32 %v802, %v738
  %v835 = vadd.f32 %v803, %v739
  %v836 = vadd.f32 %v804, %v740
  %v837 = vadd.f32 %v805, %v741
  %v838 = vadd.f32 %v806, %v742
  %v839 = vadd.f32 %v807, %v743
  %v840 = vadd.f32 %v808, %v744
  %v841 = vadd.f32 %v809, %v745
  %v842 = vadd.f32 %v810, %v746
  %v843 = vadd.f32 %v811, %v747
  %v844 = vadd.f32 %v812, %v748
  %v845 = vadd.f32 %v813, %v749
  %v846 = vadd.f32 %v814, %v750
  %v847 = vadd.f32 %v815, %v751
  %v848 = vadd.f32 %v816, %v752
  %v849 = vadd.f32 %v817, %v753
  %v850 = vadd.f32 %v818, %v754
  %v851 = vadd.f32 %v819, %v755
  %v852 = vadd.f32 %v820, %v756
  %v853 = vadd.f32 %v821, %v757
  %v854 = vadd.f32 %v822, %v758
  %v855 = vadd.f32 %v823, %v759
  %v856 = vadd.f32 %v824, %v760
  %v857 = vadd.f32 %v825, %v761
  %v858 = vadd.f32 %v826, %v762
  %v859 = vadd.f32 %v827, %v763
  %v860 = vadd.f32 %v828, %v764
  %v861 = vadd.f32 %v829, %v765
  %v862 = vadd.f32 %v830, %v766
  %v863 = vadd.f32 %v831, %v767
  %864 = vst [vmem:[#allocation3] sm:$0xff] %v832
  %865 = vst [vmem:[#allocation3 + $0x8] sm:$0xff] %v833
  %866 = vst [vmem:[#allocation3 + $0x10] sm:$0xff] %v834
  %867 = vst [vmem:[#allocation3 + $0x18] sm:$0xff] %v835
  %868 = vst [vmem:[#allocation3 + $0x20] sm:$0xff] %v836
  %869 = vst [vmem:[#allocation3 + $0x28] sm:$0xff] %v837
  %870 = vst [vmem:[#allocation3 + $0x30] sm:$0xff] %v838
  %871 = vst [vmem:[#allocation3 + $0x38] sm:$0xff] %v839
  %872 = vst [vmem:[#allocation3 + $0x40] sm:$0xff] %v840
  %873 = vst [vmem:[#allocation3 + $0x48] sm:$0xff] %v841
  %874 = vst [vmem:[#allocation3 + $0x50] sm:$0xff] %v842
  %875 = vst [vmem:[#allocation3 + $0x58] sm:$0xff] %v843
  %876 = vst [vmem:[#allocation3 + $0x60] sm:$0xff] %v844
  %877 = vst [vmem:[#allocation3 + $0x68] sm:$0xff] %v845
  %878 = vst [vmem:[#allocation3 + $0x70] sm:$0xff] %v846
  %879 = vst [vmem:[#allocation3 + $0x78] sm:$0xff] %v847
  %880 = vst [vmem:[#allocation3 + $0x80] sm:$0xff] %v848
  %881 = vst [vmem:[#allocation3 + $0x88] sm:$0xff] %v849
  %882 = vst [vmem:[#allocation3 + $0x90] sm:$0xff] %v850
  %883 = vst [vmem:[#allocation3 + $0x98] sm:$0xff] %v851
  %884 = vst [vmem:[#allocation3 + $0xa0] sm:$0xff] %v852
  %885 = vst [vmem:[#allocation3 + $0xa8] sm:$0xff] %v853
  %886 = vst [vmem:[#allocation3 + $0xb0] sm:$0xff] %v854
  %887 = vst [vmem:[#allocation3 + $0xb8] sm:$0xff] %v855
  %888 = vst [vmem:[#allocation3 + $0xc0] sm:$0xff] %v856
  %889 = vst [vmem:[#allocation3 + $0xc8] sm:$0xff] %v857
  %890 = vst [vmem:[#allocation3 + $0xd0] sm:$0xff] %v858
  %891 = vst [vmem:[#allocation3 + $0xd8] sm:$0xff] %v859
  %892 = vst [vmem:[#allocation3 + $0xe0] sm:$0xff] %v860
  %893 = vst [vmem:[#allocation3 + $0xe8] sm:$0xff] %v861
  %894 = vst [vmem:[#allocation3 + $0xf0] sm:$0xff] %v862
  %895 = vst [vmem:[#allocation3 + $0xf8] sm:$0xff] %v863
  %v896 = vld [vmem:[#allocation2] sm:$0xff]
  %v897 = vld [vmem:[#allocation2 + $0x8] sm:$0xff]
  %v898 = vld [vmem:[#allocation2 + $0x10] sm:$0xff]
  %v899 = vld [vmem:[#allocation2 + $0x18] sm:$0xff]
  %v900 = vld [vmem:[#allocation2 + $0x20] sm:$0xff]
  %v901 = vld [vmem:[#allocation2 + $0x28] sm:$0xff]
  %v902 = vld [vmem:[#allocation2 + $0x30] sm:$0xff]
  %v903 = vld [vmem:[#allocation2 + $0x38] sm:$0xff]
  %v904 = vld [vmem:[#allocation2 + $0x40] sm:$0xff]
  %v905 = vld [vmem:[#allocation2 + $0x48] sm:$0xff]
  %v906 = vld [vmem:[#allocation2 + $0x50] sm:$0xff]
  %v907 = vld [vmem:[#allocation2 + $0x58] sm:$0xff]
  %v908 = vld [vmem:[#allocation2 + $0x60] sm:$0xff]
  %v909 = vld [vmem:[#allocation2 + $0x68] sm:$0xff]
  %v910 = vld [vmem:[#allocation2 + $0x70] sm:$0xff]
  %v911 = vld [vmem:[#allocation2 + $0x78] sm:$0xff]
  %v912 = vld [vmem:[#allocation2 + $0x80] sm:$0xff]
  %v913 = vld [vmem:[#allocation2 + $0x88] sm:$0xff]
  %v914 = vld [vmem:[#allocation2 + $0x90] sm:$0xff]
  %v915 = vld [vmem:[#allocation2 + $0x98] sm:$0xff]
  %v916 = vld [vmem:[#allocation2 + $0xa0] sm:$0xff]
  %v917 = vld [vmem:[#allocation2 + $0xa8] sm:$0xff]
  %v918 = vld [vmem:[#allocation2 + $0xb0] sm:$0xff]
  %v919 = vld [vmem:[#allocation2 + $0xb8] sm:$0xff]
  %v920 = vld [vmem:[#allocation2 + $0xc0] sm:$0xff]
  %v921 = vld [vmem:[#allocation2 + $0xc8] sm:$0xff]
  %v922 = vld [vmem:[#allocation2 + $0xd0] sm:$0xff]
  %v923 = vld [vmem:[#allocation2 + $0xd8] sm:$0xff]
  %v924 = vld [vmem:[#allocation2 + $0xe0] sm:$0xff]
  %v925 = vld [vmem:[#allocation2 + $0xe8] sm:$0xff]
  %v926 = vld [vmem:[#allocation2 + $0xf0] sm:$0xff]
  %v927 = vld [vmem:[#allocation2 + $0xf8] sm:$0xff]
  %v928 = vmul.f32 %v178, %v896
  %v929 = vmul.f32 %v183, %v897
  %v930 = vmul.f32 %v188, %v898
  %v931 = vmul.f32 %v193, %v899
  %v932 = vmul.f32 %v198, %v900
  %v933 = vmul.f32 %v203, %v901
  %v934 = vmul.f32 %v208, %v902
  %v935 = vmul.f32 %v213, %v903
  %v936 = vmul.f32 %v218, %v904
  %v937 = vmul.f32 %v223, %v905
  %v938 = vmul.f32 %v228, %v906
  %v939 = vmul.f32 %v233, %v907
  %v940 = vmul.f32 %v238, %v908
  %v941 = vmul.f32 %v243, %v909
  %v942 = vmul.f32 %v248, %v910
  %v943 = vmul.f32 %v253, %v911
  %v944 = vmul.f32 %v258, %v912
  %v945 = vmul.f32 %v263, %v913
  %v946 = vmul.f32 %v268, %v914
  %v947 = vmul.f32 %v273, %v915
  %v948 = vmul.f32 %v278, %v916
  %v949 = vmul.f32 %v283, %v917
  %v950 = vmul.f32 %v288, %v918
  %v951 = vmul.f32 %v293, %v919
  %v952 = vmul.f32 %v298, %v920
  %v953 = vmul.f32 %v303, %v921
  %v954 = vmul.f32 %v308, %v922
  %v955 = vmul.f32 %v313, %v923
  %v956 = vmul.f32 %v318, %v924
  %v957 = vmul.f32 %v323, %v925
  %v958 = vmul.f32 %v328, %v926
  %v959 = vmul.f32 %v333, %v927
  %v960 = vpack.c.bf16 %v929, %v928
  %v961 = vpack.c.bf16 %v931, %v930
  %v962 = vpack.c.bf16 %v933, %v932
  %v963 = vpack.c.bf16 %v935, %v934
  %v964 = vpack.c.bf16 %v937, %v936
  %v965 = vpack.c.bf16 %v939, %v938
  %v966 = vpack.c.bf16 %v941, %v940
  %v967 = vpack.c.bf16 %v943, %v942
  %v968 = vpack.c.bf16 %v945, %v944
  %v969 = vpack.c.bf16 %v947, %v946
  %v970 = vpack.c.bf16 %v949, %v948
  %v971 = vpack.c.bf16 %v951, %v950
  %v972 = vpack.c.bf16 %v953, %v952
  %v973 = vpack.c.bf16 %v955, %v954
  %v974 = vpack.c.bf16 %v957, %v956
  %v975 = vpack.c.bf16 %v959, %v958
  %v976 = vld [vmem:[%s0] sm:$0xff]
  %v977 = vld [vmem:[%s0 + $0x8] sm:$0xff]
  %v978 = vld [vmem:[%s0 + $0x10] sm:$0xff]
  %v979 = vld [vmem:[%s0 + $0x18] sm:$0xff]
  %v980 = vld [vmem:[%s0 + $0x20] sm:$0xff]
  %v981 = vld [vmem:[%s0 + $0x28] sm:$0xff]
  %v982 = vld [vmem:[%s0 + $0x30] sm:$0xff]
  %v983 = vld [vmem:[%s0 + $0x38] sm:$0xff]
  %v984 = vld [vmem:[%s0 + $0x40] sm:$0xff]
  %v985 = vld [vmem:[%s0 + $0x48] sm:$0xff]
  %v986 = vld [vmem:[%s0 + $0x50] sm:$0xff]
  %v987 = vld [vmem:[%s0 + $0x58] sm:$0xff]
  %v988 = vld [vmem:[%s0 + $0x60] sm:$0xff]
  %v989 = vld [vmem:[%s0 + $0x68] sm:$0xff]
  %v990 = vld [vmem:[%s0 + $0x70] sm:$0xff]
  %v991 = vld [vmem:[%s0 + $0x78] sm:$0xff]
  %v992 = vld [vmem:[%s0 + $0x80] sm:$0xff]
  %v993 = vld [vmem:[%s0 + $0x88] sm:$0xff]
  %v994 = vld [vmem:[%s0 + $0x90] sm:$0xff]
  %v995 = vld [vmem:[%s0 + $0x98] sm:$0xff]
  %v996 = vld [vmem:[%s0 + $0xa0] sm:$0xff]
  %v997 = vld [vmem:[%s0 + $0xa8] sm:$0xff]
  %v998 = vld [vmem:[%s0 + $0xb0] sm:$0xff]
  %v999 = vld [vmem:[%s0 + $0xb8] sm:$0xff]
  %v1000 = vld [vmem:[%s0 + $0xc0] sm:$0xff]
  %v1001 = vld [vmem:[%s0 + $0xc8] sm:$0xff]
  %v1002 = vld [vmem:[%s0 + $0xd0] sm:$0xff]
  %v1003 = vld [vmem:[%s0 + $0xd8] sm:$0xff]
  %v1004 = vld [vmem:[%s0 + $0xe0] sm:$0xff]
  %v1005 = vld [vmem:[%s0 + $0xe8] sm:$0xff]
  %v1006 = vld [vmem:[%s0 + $0xf0] sm:$0xff]
  %v1007 = vld [vmem:[%s0 + $0xf8] sm:$0xff]
  %v1040 = vunpack.c.l.b16 %v976
  %v1041 = vunpack.c.h.b16 %v976
  %v1042 = vunpack.c.l.b16 %v977
  %v1043 = vunpack.c.h.b16 %v977
  %v1044 = vunpack.c.l.b16 %v978
  %v1045 = vunpack.c.h.b16 %v978
  %v1046 = vunpack.c.l.b16 %v979
  %v1047 = vunpack.c.h.b16 %v979
  %v1048 = vunpack.c.l.b16 %v980
  %v1049 = vunpack.c.h.b16 %v980
  %v1050 = vunpack.c.l.b16 %v981
  %v1051 = vunpack.c.h.b16 %v981
  %v1052 = vunpack.c.l.b16 %v982
  %v1053 = vunpack.c.h.b16 %v982
  %v1054 = vunpack.c.l.b16 %v983
  %v1055 = vunpack.c.h.b16 %v983
  %v1056 = vunpack.c.l.b16 %v984
  %v1057 = vunpack.c.h.b16 %v984
  %v1058 = vunpack.c.l.b16 %v985
  %v1059 = vunpack.c.h.b16 %v985
  %v1060 = vunpack.c.l.b16 %v986
  %v1061 = vunpack.c.h.b16 %v986
  %v1062 = vunpack.c.l.b16 %v987
  %v1063 = vunpack.c.h.b16 %v987
  %v1064 = vunpack.c.l.b16 %v988
  %v1065 = vunpack.c.h.b16 %v988
  %v1066 = vunpack.c.l.b16 %v989
  %v1067 = vunpack.c.h.b16 %v989
  %v1068 = vunpack.c.l.b16 %v990
  %v1069 = vunpack.c.h.b16 %v990
  %v1070 = vunpack.c.l.b16 %v991
  %v1071 = vunpack.c.h.b16 %v991
  %v1072 = vunpack.c.l.b16 %v992
  %v1073 = vunpack.c.h.b16 %v992
  %v1074 = vunpack.c.l.b16 %v993
  %v1075 = vunpack.c.h.b16 %v993
  %v1076 = vunpack.c.l.b16 %v994
  %v1077 = vunpack.c.h.b16 %v994
  %v1078 = vunpack.c.l.b16 %v995
  %v1079 = vunpack.c.h.b16 %v995
  %v1080 = vunpack.c.l.b16 %v996
  %v1081 = vunpack.c.h.b16 %v996
  %v1082 = vunpack.c.l.b16 %v997
  %v1083 = vunpack.c.h.b16 %v997
  %v1084 = vunpack.c.l.b16 %v998
  %v1085 = vunpack.c.h.b16 %v998
  %v1086 = vunpack.c.l.b16 %v999
  %v1087 = vunpack.c.h.b16 %v999
  %v1088 = vunpack.c.l.b16 %v1000
  %v1089 = vunpack.c.h.b16 %v1000
  %v1090 = vunpack.c.l.b16 %v1001
  %v1091 = vunpack.c.h.b16 %v1001
  %v1092 = vunpack.c.l.b16 %v1002
  %v1093 = vunpack.c.h.b16 %v1002
  %v1094 = vunpack.c.l.b16 %v1003
  %v1095 = vunpack.c.h.b16 %v1003
  %v1096 = vunpack.c.l.b16 %v1004
  %v1097 = vunpack.c.h.b16 %v1004
  %v1098 = vunpack.c.l.b16 %v1005
  %v1099 = vunpack.c.h.b16 %v1005
  %v1100 = vunpack.c.l.b16 %v1006
  %v1101 = vunpack.c.h.b16 %v1006
  %v1102 = vunpack.c.l.b16 %v1007
  %v1103 = vunpack.c.h.b16 %v1007
  %v1104 = vpack.c.b16 %v1042, %v1040
  %v1105 = vpack.c.b16 %v1043, %v1041
  %v1106 = vpack.c.b16 %v1046, %v1044
  %v1107 = vpack.c.b16 %v1047, %v1045
  %v1108 = vpack.c.b16 %v1050, %v1048
  %v1109 = vpack.c.b16 %v1051, %v1049
  %v1110 = vpack.c.b16 %v1054, %v1052
  %v1111 = vpack.c.b16 %v1055, %v1053
  %v1112 = vpack.c.b16 %v1058, %v1056
  %v1113 = vpack.c.b16 %v1059, %v1057
  %v1114 = vpack.c.b16 %v1062, %v1060
  %v1115 = vpack.c.b16 %v1063, %v1061
  %v1116 = vpack.c.b16 %v1066, %v1064
  %v1117 = vpack.c.b16 %v1067, %v1065
  %v1118 = vpack.c.b16 %v1070, %v1068
  %v1119 = vpack.c.b16 %v1071, %v1069
  %v1120 = vpack.c.b16 %v1074, %v1072
  %v1121 = vpack.c.b16 %v1075, %v1073
  %v1122 = vpack.c.b16 %v1078, %v1076
  %v1123 = vpack.c.b16 %v1079, %v1077
  %v1124 = vpack.c.b16 %v1082, %v1080
  %v1125 = vpack.c.b16 %v1083, %v1081
  %v1126 = vpack.c.b16 %v1086, %v1084
  %v1127 = vpack.c.b16 %v1087, %v1085
  %v1128 = vpack.c.b16 %v1090, %v1088
  %v1129 = vpack.c.b16 %v1091, %v1089
  %v1130 = vpack.c.b16 %v1094, %v1092
  %v1131 = vpack.c.b16 %v1095, %v1093
  %v1132 = vpack.c.b16 %v1098, %v1096
  %v1133 = vpack.c.b16 %v1099, %v1097
  %v1134 = vpack.c.b16 %v1102, %v1100
  %v1135 = vpack.c.b16 %v1103, %v1101
  %1168 = vmatprep.subr.bf16.mxu0 0
  %1169 = vmatpush1.bf16.msra.mxu0 %v967
  %1170 = vmatprep.subr.bf16.mxu0 0
  %1171 = vmatpush1.bf16.msra.mxu0 %v966
  %1172 = vmatprep.subr.bf16.mxu0 0
  %1173 = vmatpush1.bf16.msra.mxu0 %v965
  %1174 = vmatprep.subr.bf16.mxu0 0
  %1175 = vmatpush1.bf16.msra.mxu0 %v964
  %1176 = vmatprep.subr.bf16.mxu0 0
  %1177 = vmatpush1.bf16.msra.mxu0 %v963
  %1178 = vmatprep.subr.bf16.mxu0 0
  %1179 = vmatpush1.bf16.msra.mxu0 %v962
  %1180 = vmatprep.subr.bf16.mxu0 0
  %1181 = vmatpush1.bf16.msra.mxu0 %v961
  %1182 = vmatprep.subr.bf16.mxu0 0
  %1183 = vmatpush1.bf16.msra.mxu0 %v960
  %1184 = vmatprep.subr.bf16.mxu0 0
  %1185 = vmatpush2.bf16.msra.mxu0 %v975
  %1186 = vmatprep.subr.bf16.mxu0 0
  %1187 = vmatpush2.bf16.msra.mxu0 %v974
  %1188 = vmatprep.subr.bf16.mxu0 0
  %1189 = vmatpush2.bf16.msra.mxu0 %v973
  %1190 = vmatprep.subr.bf16.mxu0 0
  %1191 = vmatpush2.bf16.msra.mxu0 %v972
  %1192 = vmatprep.subr.bf16.mxu0 0
  %1193 = vmatpush2.bf16.msra.mxu0 %v971
  %1194 = vmatprep.subr.bf16.mxu0 0
  %1195 = vmatpush2.bf16.msra.mxu0 %v970
  %1196 = vmatprep.subr.bf16.mxu0 0
  %1197 = vmatpush2.bf16.msra.mxu0 %v969
  %1198 = vmatprep.subr.bf16.mxu0 0
  %1199 = vmatpush2.bf16.msra.mxu0 %v968
  %1200 = vmatprep.mubr.bf16.mxu0 %v1105
  %1201 = vmatmul.mubr.bf16.gmra.mxu0 %v1104
  %v1202 = vpop.f32.mrf.mxu0
  %v1203 = vadd.f32 0.0, %v1202
  %v1204 = vpop.f32.mrf.mxu0
  %v1205 = vpop.f32.mrf.mxu0
  %v1206 = vadd.f32 0.0, %v1205
  %v1207 = vpop.f32.mrf.mxu0
  %1208 = vmatprep.mubr.bf16.mxu0 %v1107
  %1209 = vmatmul.mubr.bf16.gmra.mxu0 %v1106
  %v1210 = vpop.f32.mrf.mxu0
  %v1211 = vadd.f32 0.0, %v1210
  %v1212 = vpop.f32.mrf.mxu0
  %v1213 = vpop.f32.mrf.mxu0
  %v1214 = vadd.f32 0.0, %v1213
  %v1215 = vpop.f32.mrf.mxu0
  %1216 = vmatprep.mubr.bf16.mxu0 %v1109
  %1217 = vmatmul.mubr.bf16.gmra.mxu0 %v1108
  %v1218 = vpop.f32.mrf.mxu0
  %v1219 = vadd.f32 0.0, %v1218
  %v1220 = vpop.f32.mrf.mxu0
  %v1221 = vpop.f32.mrf.mxu0
  %v1222 = vadd.f32 0.0, %v1221
  %v1223 = vpop.f32.mrf.mxu0
  %1224 = vmatprep.mubr.bf16.mxu0 %v1111
  %1225 = vmatmul.mubr.bf16.gmra.mxu0 %v1110
  %v1226 = vpop.f32.mrf.mxu0
  %v1227 = vadd.f32 0.0, %v1226
  %v1228 = vpop.f32.mrf.mxu0
  %v1229 = vpop.f32.mrf.mxu0
  %v1230 = vadd.f32 0.0, %v1229
  %v1231 = vpop.f32.mrf.mxu0
  %1232 = vmatprep.mubr.bf16.mxu0 %v1113
  %1233 = vmatmul.mubr.bf16.gmra.mxu0 %v1112
  %v1234 = vpop.f32.mrf.mxu0
  %v1235 = vadd.f32 0.0, %v1234
  %v1236 = vpop.f32.mrf.mxu0
  %v1237 = vpop.f32.mrf.mxu0
  %v1238 = vadd.f32 0.0, %v1237
  %v1239 = vpop.f32.mrf.mxu0
  %1240 = vmatprep.mubr.bf16.mxu0 %v1115
  %1241 = vmatmul.mubr.bf16.gmra.mxu0 %v1114
  %v1242 = vpop.f32.mrf.mxu0
  %v1243 = vadd.f32 0.0, %v1242
  %v1244 = vpop.f32.mrf.mxu0
  %v1245 = vpop.f32.mrf.mxu0
  %v1246 = vadd.f32 0.0, %v1245
  %v1247 = vpop.f32.mrf.mxu0
  %1248 = vmatprep.mubr.bf16.mxu0 %v1117
  %1249 = vmatmul.mubr.bf16.gmra.mxu0 %v1116
  %v1250 = vpop.f32.mrf.mxu0
  %v1251 = vadd.f32 0.0, %v1250
  %v1252 = vpop.f32.mrf.mxu0
  %v1253 = vpop.f32.mrf.mxu0
  %v1254 = vadd.f32 0.0, %v1253
  %v1255 = vpop.f32.mrf.mxu0
  %1256 = vmatprep.mubr.bf16.mxu0 %v1119
  %1257 = vmatmul.mubr.bf16.gmra.mxu0 %v1118
  %v1258 = vpop.f32.mrf.mxu0
  %v1259 = vadd.f32 0.0, %v1258
  %v1260 = vpop.f32.mrf.mxu0
  %v1261 = vpop.f32.mrf.mxu0
  %v1262 = vadd.f32 0.0, %v1261
  %v1263 = vpop.f32.mrf.mxu0
  %1264 = vmatprep.mubr.bf16.mxu0 %v1121
  %1265 = vmatmul.mubr.bf16.gmra.mxu0 %v1120
  %v1266 = vpop.f32.mrf.mxu0
  %v1267 = vadd.f32 0.0, %v1266
  %v1268 = vpop.f32.mrf.mxu0
  %v1269 = vpop.f32.mrf.mxu0
  %v1270 = vadd.f32 0.0, %v1269
  %v1271 = vpop.f32.mrf.mxu0
  %1272 = vmatprep.mubr.bf16.mxu0 %v1123
  %1273 = vmatmul.mubr.bf16.gmra.mxu0 %v1122
  %v1274 = vpop.f32.mrf.mxu0
  %v1275 = vadd.f32 0.0, %v1274
  %v1276 = vpop.f32.mrf.mxu0
  %v1277 = vpop.f32.mrf.mxu0
  %v1278 = vadd.f32 0.0, %v1277
  %v1279 = vpop.f32.mrf.mxu0
  %1280 = vmatprep.mubr.bf16.mxu0 %v1125
  %1281 = vmatmul.mubr.bf16.gmra.mxu0 %v1124
  %v1282 = vpop.f32.mrf.mxu0
  %v1283 = vadd.f32 0.0, %v1282
  %v1284 = vpop.f32.mrf.mxu0
  %v1285 = vpop.f32.mrf.mxu0
  %v1286 = vadd.f32 0.0, %v1285
  %v1287 = vpop.f32.mrf.mxu0
  %1288 = vmatprep.mubr.bf16.mxu0 %v1127
  %1289 = vmatmul.mubr.bf16.gmra.mxu0 %v1126
  %v1290 = vpop.f32.mrf.mxu0
  %v1291 = vadd.f32 0.0, %v1290
  %v1292 = vpop.f32.mrf.mxu0
  %v1293 = vpop.f32.mrf.mxu0
  %v1294 = vadd.f32 0.0, %v1293
  %v1295 = vpop.f32.mrf.mxu0
  %1296 = vmatprep.mubr.bf16.mxu0 %v1129
  %1297 = vmatmul.mubr.bf16.gmra.mxu0 %v1128
  %v1298 = vpop.f32.mrf.mxu0
  %v1299 = vadd.f32 0.0, %v1298
  %v1300 = vpop.f32.mrf.mxu0
  %v1301 = vpop.f32.mrf.mxu0
  %v1302 = vadd.f32 0.0, %v1301
  %v1303 = vpop.f32.mrf.mxu0
  %1304 = vmatprep.mubr.bf16.mxu0 %v1131
  %1305 = vmatmul.mubr.bf16.gmra.mxu0 %v1130
  %v1306 = vpop.f32.mrf.mxu0
  %v1307 = vadd.f32 0.0, %v1306
  %v1308 = vpop.f32.mrf.mxu0
  %v1309 = vpop.f32.mrf.mxu0
  %v1310 = vadd.f32 0.0, %v1309
  %v1311 = vpop.f32.mrf.mxu0
  %1312 = vmatprep.mubr.bf16.mxu0 %v1133
  %1313 = vmatmul.mubr.bf16.gmra.mxu0 %v1132
  %v1314 = vpop.f32.mrf.mxu0
  %v1315 = vadd.f32 0.0, %v1314
  %v1316 = vpop.f32.mrf.mxu0
  %v1317 = vpop.f32.mrf.mxu0
  %v1318 = vadd.f32 0.0, %v1317
  %v1319 = vpop.f32.mrf.mxu0
  %1320 = vmatprep.mubr.bf16.mxu0 %v1135
  %1321 = vmatmul.mubr.bf16.gmra.mxu0 %v1134
  %v1322 = vpop.f32.mrf.mxu0
  %v1323 = vadd.f32 0.0, %v1322
  %v1324 = vpop.f32.mrf.mxu0
  %v1325 = vpop.f32.mrf.mxu0
  %v1326 = vadd.f32 0.0, %v1325
  %v1327 = vpop.f32.mrf.mxu0
  %1328 = vdwg.mxu0
  %v1329 = vmul.f32 %v178, %v1203
  %v1330 = vmul.f32 %v183, %v1206
  %v1331 = vmul.f32 %v188, %v1211
  %v1332 = vmul.f32 %v193, %v1214
  %v1333 = vmul.f32 %v198, %v1219
  %v1334 = vmul.f32 %v203, %v1222
  %v1335 = vmul.f32 %v208, %v1227
  %v1336 = vmul.f32 %v213, %v1230
  %v1337 = vmul.f32 %v218, %v1235
  %v1338 = vmul.f32 %v223, %v1238
  %v1339 = vmul.f32 %v228, %v1243
  %v1340 = vmul.f32 %v233, %v1246
  %v1341 = vmul.f32 %v238, %v1251
  %v1342 = vmul.f32 %v243, %v1254
  %v1343 = vmul.f32 %v248, %v1259
  %v1344 = vmul.f32 %v253, %v1262
  %v1345 = vmul.f32 %v258, %v1267
  %v1346 = vmul.f32 %v263, %v1270
  %v1347 = vmul.f32 %v268, %v1275
  %v1348 = vmul.f32 %v273, %v1278
  %v1349 = vmul.f32 %v278, %v1283
  %v1350 = vmul.f32 %v283, %v1286
  %v1351 = vmul.f32 %v288, %v1291
  %v1352 = vmul.f32 %v293, %v1294
  %v1353 = vmul.f32 %v298, %v1299
  %v1354 = vmul.f32 %v303, %v1302
  %v1355 = vmul.f32 %v308, %v1307
  %v1356 = vmul.f32 %v313, %v1310
  %v1357 = vmul.f32 %v318, %v1315
  %v1358 = vmul.f32 %v323, %v1318
  %v1359 = vmul.f32 %v328, %v1323
  %v1360 = vmul.f32 %v333, %v1326
  %1361 = vst [vmem:[#allocation2] sm:$0xff] %v1329
  %1362 = vst [vmem:[#allocation2 + $0x8] sm:$0xff] %v1330
  %1363 = vst [vmem:[#allocation2 + $0x10] sm:$0xff] %v1331
  %1364 = vst [vmem:[#allocation2 + $0x18] sm:$0xff] %v1332
  %1365 = vst [vmem:[#allocation2 + $0x20] sm:$0xff] %v1333
  %1366 = vst [vmem:[#allocation2 + $0x28] sm:$0xff] %v1334
  %1367 = vst [vmem:[#allocation2 + $0x30] sm:$0xff] %v1335
  %1368 = vst [vmem:[#allocation2 + $0x38] sm:$0xff] %v1336
  %1369 = vst [vmem:[#allocation2 + $0x40] sm:$0xff] %v1337
  %1370 = vst [vmem:[#allocation2 + $0x48] sm:$0xff] %v1338
  %1371 = vst [vmem:[#allocation2 + $0x50] sm:$0xff] %v1339
  %1372 = vst [vmem:[#allocation2 + $0x58] sm:$0xff] %v1340
  %1373 = vst [vmem:[#allocation2 + $0x60] sm:$0xff] %v1341
  %1374 = vst [vmem:[#allocation2 + $0x68] sm:$0xff] %v1342
  %1375 = vst [vmem:[#allocation2 + $0x70] sm:$0xff] %v1343
  %1376 = vst [vmem:[#allocation2 + $0x78] sm:$0xff] %v1344
  %1377 = vst [vmem:[#allocation2 + $0x80] sm:$0xff] %v1345
  %1378 = vst [vmem:[#allocation2 + $0x88] sm:$0xff] %v1346
  %1379 = vst [vmem:[#allocation2 + $0x90] sm:$0xff] %v1347
  %1380 = vst [vmem:[#allocation2 + $0x98] sm:$0xff] %v1348
  %1381 = vst [vmem:[#allocation2 + $0xa0] sm:$0xff] %v1349
  %1382 = vst [vmem:[#allocation2 + $0xa8] sm:$0xff] %v1350
  %1383 = vst [vmem:[#allocation2 + $0xb0] sm:$0xff] %v1351
  %1384 = vst [vmem:[#allocation2 + $0xb8] sm:$0xff] %v1352
  %1385 = vst [vmem:[#allocation2 + $0xc0] sm:$0xff] %v1353
  %1386 = vst [vmem:[#allocation2 + $0xc8] sm:$0xff] %v1354
  %1387 = vst [vmem:[#allocation2 + $0xd0] sm:$0xff] %v1355
  %1388 = vst [vmem:[#allocation2 + $0xd8] sm:$0xff] %v1356
  %1389 = vst [vmem:[#allocation2 + $0xe0] sm:$0xff] %v1357
  %1390 = vst [vmem:[#allocation2 + $0xe8] sm:$0xff] %v1358
  %1391 = vst [vmem:[#allocation2 + $0xf0] sm:$0xff] %v1359
  %1392 = vst [vmem:[#allocation2 + $0xf8] sm:$0xff] %v1360
  %v1393 = vld [vmem:[#allocation3] sm:$0xff]
  %v1394 = vld [vmem:[#allocation3 + $0x8] sm:$0xff]
  %v1395 = vld [vmem:[#allocation3 + $0x10] sm:$0xff]
  %v1396 = vld [vmem:[#allocation3 + $0x18] sm:$0xff]
  %v1397 = vld [vmem:[#allocation3 + $0x20] sm:$0xff]
  %v1398 = vld [vmem:[#allocation3 + $0x28] sm:$0xff]
  %v1399 = vld [vmem:[#allocation3 + $0x30] sm:$0xff]
  %v1400 = vld [vmem:[#allocation3 + $0x38] sm:$0xff]
  %v1401 = vld [vmem:[#allocation3 + $0x40] sm:$0xff]
  %v1402 = vld [vmem:[#allocation3 + $0x48] sm:$0xff]
  %v1403 = vld [vmem:[#allocation3 + $0x50] sm:$0xff]
  %v1404 = vld [vmem:[#allocation3 + $0x58] sm:$0xff]
  %v1405 = vld [vmem:[#allocation3 + $0x60] sm:$0xff]
  %v1406 = vld [vmem:[#allocation3 + $0x68] sm:$0xff]
  %v1407 = vld [vmem:[#allocation3 + $0x70] sm:$0xff]
  %v1408 = vld [vmem:[#allocation3 + $0x78] sm:$0xff]
  %v1409 = vld [vmem:[#allocation3 + $0x80] sm:$0xff]
  %v1410 = vld [vmem:[#allocation3 + $0x88] sm:$0xff]
  %v1411 = vld [vmem:[#allocation3 + $0x90] sm:$0xff]
  %v1412 = vld [vmem:[#allocation3 + $0x98] sm:$0xff]
  %v1413 = vld [vmem:[#allocation3 + $0xa0] sm:$0xff]
  %v1414 = vld [vmem:[#allocation3 + $0xa8] sm:$0xff]
  %v1415 = vld [vmem:[#allocation3 + $0xb0] sm:$0xff]
  %v1416 = vld [vmem:[#allocation3 + $0xb8] sm:$0xff]
  %v1417 = vld [vmem:[#allocation3 + $0xc0] sm:$0xff]
  %v1418 = vld [vmem:[#allocation3 + $0xc8] sm:$0xff]
  %v1419 = vld [vmem:[#allocation3 + $0xd0] sm:$0xff]
  %v1420 = vld [vmem:[#allocation3 + $0xd8] sm:$0xff]
  %v1421 = vld [vmem:[#allocation3 + $0xe0] sm:$0xff]
  %v1422 = vld [vmem:[#allocation3 + $0xe8] sm:$0xff]
  %v1423 = vld [vmem:[#allocation3 + $0xf0] sm:$0xff]
  %v1424 = vld [vmem:[#allocation3 + $0xf8] sm:$0xff]
  %v1425 = vadd.f32 %v1393, %v1329
  %v1426 = vadd.f32 %v1394, %v1330
  %v1427 = vadd.f32 %v1395, %v1331
  %v1428 = vadd.f32 %v1396, %v1332
  %v1429 = vadd.f32 %v1397, %v1333
  %v1430 = vadd.f32 %v1398, %v1334
  %v1431 = vadd.f32 %v1399, %v1335
  %v1432 = vadd.f32 %v1400, %v1336
  %v1433 = vadd.f32 %v1401, %v1337
  %v1434 = vadd.f32 %v1402, %v1338
  %v1435 = vadd.f32 %v1403, %v1339
  %v1436 = vadd.f32 %v1404, %v1340
  %v1437 = vadd.f32 %v1405, %v1341
  %v1438 = vadd.f32 %v1406, %v1342
  %v1439 = vadd.f32 %v1407, %v1343
  %v1440 = vadd.f32 %v1408, %v1344
  %v1441 = vadd.f32 %v1409, %v1345
  %v1442 = vadd.f32 %v1410, %v1346
  %v1443 = vadd.f32 %v1411, %v1347
  %v1444 = vadd.f32 %v1412, %v1348
  %v1445 = vadd.f32 %v1413, %v1349
  %v1446 = vadd.f32 %v1414, %v1350
  %v1447 = vadd.f32 %v1415, %v1351
  %v1448 = vadd.f32 %v1416, %v1352
  %v1449 = vadd.f32 %v1417, %v1353
  %v1450 = vadd.f32 %v1418, %v1354
  %v1451 = vadd.f32 %v1419, %v1355
  %v1452 = vadd.f32 %v1420, %v1356
  %v1453 = vadd.f32 %v1421, %v1357
  %v1454 = vadd.f32 %v1422, %v1358
  %v1455 = vadd.f32 %v1423, %v1359
  %v1456 = vadd.f32 %v1424, %v1360
  %1457 = vst [vmem:[#allocation3] sm:$0xff] %v1425
  %1458 = vst [vmem:[#allocation3 + $0x8] sm:$0xff] %v1426
  %1459 = vst [vmem:[#allocation3 + $0x10] sm:$0xff] %v1427
  %1460 = vst [vmem:[#allocation3 + $0x18] sm:$0xff] %v1428
  %1461 = vst [vmem:[#allocation3 + $0x20] sm:$0xff] %v1429
  %1462 = vst [vmem:[#allocation3 + $0x28] sm:$0xff] %v1430
  %1463 = vst [vmem:[#allocation3 + $0x30] sm:$0xff] %v1431
  %1464 = vst [vmem:[#allocation3 + $0x38] sm:$0xff] %v1432
  %1465 = vst [vmem:[#allocation3 + $0x40] sm:$0xff] %v1433
  %1466 = vst [vmem:[#allocation3 + $0x48] sm:$0xff] %v1434
  %1467 = vst [vmem:[#allocation3 + $0x50] sm:$0xff] %v1435
  %1468 = vst [vmem:[#allocation3 + $0x58] sm:$0xff] %v1436
  %1469 = vst [vmem:[#allocation3 + $0x60] sm:$0xff] %v1437
  %1470 = vst [vmem:[#allocation3 + $0x68] sm:$0xff] %v1438
  %1471 = vst [vmem:[#allocation3 + $0x70] sm:$0xff] %v1439
  %1472 = vst [vmem:[#allocation3 + $0x78] sm:$0xff] %v1440
  %1473 = vst [vmem:[#allocation3 + $0x80] sm:$0xff] %v1441
  %1474 = vst [vmem:[#allocation3 + $0x88] sm:$0xff] %v1442
  %1475 = vst [vmem:[#allocation3 + $0x90] sm:$0xff] %v1443
  %1476 = vst [vmem:[#allocation3 + $0x98] sm:$0xff] %v1444
  %1477 = vst [vmem:[#allocation3 + $0xa0] sm:$0xff] %v1445
  %1478 = vst [vmem:[#allocation3 + $0xa8] sm:$0xff] %v1446
  %1479 = vst [vmem:[#allocation3 + $0xb0] sm:$0xff] %v1447
  %1480 = vst [vmem:[#allocation3 + $0xb8] sm:$0xff] %v1448
  %1481 = vst [vmem:[#allocation3 + $0xc0] sm:$0xff] %v1449
  %1482 = vst [vmem:[#allocation3 + $0xc8] sm:$0xff] %v1450
  %1483 = vst [vmem:[#allocation3 + $0xd0] sm:$0xff] %v1451
  %1484 = vst [vmem:[#allocation3 + $0xd8] sm:$0xff] %v1452
  %1485 = vst [vmem:[#allocation3 + $0xe0] sm:$0xff] %v1453
  %1486 = vst [vmem:[#allocation3 + $0xe8] sm:$0xff] %v1454
  %1487 = vst [vmem:[#allocation3 + $0xf0] sm:$0xff] %v1455
  %1488 = vst [vmem:[#allocation3 + $0xf8] sm:$0xff] %v1456
  %v1489 = vld [vmem:[#allocation3] sm:$0xff]
  %v1490 = vld [vmem:[#allocation3 + $0x8] sm:$0xff]
  %v1491 = vld [vmem:[#allocation3 + $0x10] sm:$0xff]
  %v1492 = vld [vmem:[#allocation3 + $0x18] sm:$0xff]
  %v1493 = vld [vmem:[#allocation3 + $0x20] sm:$0xff]
  %v1494 = vld [vmem:[#allocation3 + $0x28] sm:$0xff]
  %v1495 = vld [vmem:[#allocation3 + $0x30] sm:$0xff]
  %v1496 = vld [vmem:[#allocation3 + $0x38] sm:$0xff]
  %v1497 = vld [vmem:[#allocation3 + $0x40] sm:$0xff]
  %v1498 = vld [vmem:[#allocation3 + $0x48] sm:$0xff]
  %v1499 = vld [vmem:[#allocation3 + $0x50] sm:$0xff]
  %v1500 = vld [vmem:[#allocation3 + $0x58] sm:$0xff]
  %v1501 = vld [vmem:[#allocation3 + $0x60] sm:$0xff]
  %v1502 = vld [vmem:[#allocation3 + $0x68] sm:$0xff]
  %v1503 = vld [vmem:[#allocation3 + $0x70] sm:$0xff]
  %v1504 = vld [vmem:[#allocation3 + $0x78] sm:$0xff]
  %v1505 = vld [vmem:[#allocation3 + $0x80] sm:$0xff]
  %v1506 = vld [vmem:[#allocation3 + $0x88] sm:$0xff]
  %v1507 = vld [vmem:[#allocation3 + $0x90] sm:$0xff]
  %v1508 = vld [vmem:[#allocation3 + $0x98] sm:$0xff]
  %v1509 = vld [vmem:[#allocation3 + $0xa0] sm:$0xff]
  %v1510 = vld [vmem:[#allocation3 + $0xa8] sm:$0xff]
  %v1511 = vld [vmem:[#allocation3 + $0xb0] sm:$0xff]
  %v1512 = vld [vmem:[#allocation3 + $0xb8] sm:$0xff]
  %v1513 = vld [vmem:[#allocation3 + $0xc0] sm:$0xff]
  %v1514 = vld [vmem:[#allocation3 + $0xc8] sm:$0xff]
  %v1515 = vld [vmem:[#allocation3 + $0xd0] sm:$0xff]
  %v1516 = vld [vmem:[#allocation3 + $0xd8] sm:$0xff]
  %v1517 = vld [vmem:[#allocation3 + $0xe0] sm:$0xff]
  %v1518 = vld [vmem:[#allocation3 + $0xe8] sm:$0xff]
  %v1519 = vld [vmem:[#allocation3 + $0xf0] sm:$0xff]
  %v1520 = vld [vmem:[#allocation3 + $0xf8] sm:$0xff]
  %v1521 = vmul.f32 %v1489, 0.33333334
  %v1522 = vmul.f32 %v1490, 0.33333334
  %v1523 = vmul.f32 %v1491, 0.33333334
  %v1524 = vmul.f32 %v1492, 0.33333334
  %v1525 = vmul.f32 %v1493, 0.33333334
  %v1526 = vmul.f32 %v1494, 0.33333334
  %v1527 = vmul.f32 %v1495, 0.33333334
  %v1528 = vmul.f32 %v1496, 0.33333334
  %v1529 = vmul.f32 %v1497, 0.33333334
  %v1530 = vmul.f32 %v1498, 0.33333334
  %v1531 = vmul.f32 %v1499, 0.33333334
  %v1532 = vmul.f32 %v1500, 0.33333334
  %v1533 = vmul.f32 %v1501, 0.33333334
  %v1534 = vmul.f32 %v1502, 0.33333334
  %v1535 = vmul.f32 %v1503, 0.33333334
  %v1536 = vmul.f32 %v1504, 0.33333334
  %v1537 = vmul.f32 %v1505, 0.33333334
  %v1538 = vmul.f32 %v1506, 0.33333334
  %v1539 = vmul.f32 %v1507, 0.33333334
  %v1540 = vmul.f32 %v1508, 0.33333334
  %v1541 = vmul.f32 %v1509, 0.33333334
  %v1542 = vmul.f32 %v1510, 0.33333334
  %v1543 = vmul.f32 %v1511, 0.33333334
  %v1544 = vmul.f32 %v1512, 0.33333334
  %v1545 = vmul.f32 %v1513, 0.33333334
  %v1546 = vmul.f32 %v1514, 0.33333334
  %v1547 = vmul.f32 %v1515, 0.33333334
  %v1548 = vmul.f32 %v1516, 0.33333334
  %v1549 = vmul.f32 %v1517, 0.33333334
  %v1550 = vmul.f32 %v1518, 0.33333334
  %v1551 = vmul.f32 %v1519, 0.33333334
  %v1552 = vmul.f32 %v1520, 0.33333334
  %1553 = vst [vmem:[%s3] sm:$0xff] %v1521
  %1554 = vst [vmem:[%s3 + $0x8] sm:$0xff] %v1522
  %1555 = vst [vmem:[%s3 + $0x10] sm:$0xff] %v1523
  %1556 = vst [vmem:[%s3 + $0x18] sm:$0xff] %v1524
  %1557 = vst [vmem:[%s3 + $0x20] sm:$0xff] %v1525
  %1558 = vst [vmem:[%s3 + $0x28] sm:$0xff] %v1526
  %1559 = vst [vmem:[%s3 + $0x30] sm:$0xff] %v1527
  %1560 = vst [vmem:[%s3 + $0x38] sm:$0xff] %v1528
  %1561 = vst [vmem:[%s3 + $0x40] sm:$0xff] %v1529
  %1562 = vst [vmem:[%s3 + $0x48] sm:$0xff] %v1530
  %1563 = vst [vmem:[%s3 + $0x50] sm:$0xff] %v1531
  %1564 = vst [vmem:[%s3 + $0x58] sm:$0xff] %v1532
  %1565 = vst [vmem:[%s3 + $0x60] sm:$0xff] %v1533
  %1566 = vst [vmem:[%s3 + $0x68] sm:$0xff] %v1534
  %1567 = vst [vmem:[%s3 + $0x70] sm:$0xff] %v1535
  %1568 = vst [vmem:[%s3 + $0x78] sm:$0xff] %v1536
  %1569 = vst [vmem:[%s3 + $0x80] sm:$0xff] %v1537
  %1570 = vst [vmem:[%s3 + $0x88] sm:$0xff] %v1538
  %1571 = vst [vmem:[%s3 + $0x90] sm:$0xff] %v1539
  %1572 = vst [vmem:[%s3 + $0x98] sm:$0xff] %v1540
  %1573 = vst [vmem:[%s3 + $0xa0] sm:$0xff] %v1541
  %1574 = vst [vmem:[%s3 + $0xa8] sm:$0xff] %v1542
  %1575 = vst [vmem:[%s3 + $0xb0] sm:$0xff] %v1543
  %1576 = vst [vmem:[%s3 + $0xb8] sm:$0xff] %v1544
  %1577 = vst [vmem:[%s3 + $0xc0] sm:$0xff] %v1545
  %1578 = vst [vmem:[%s3 + $0xc8] sm:$0xff] %v1546
  %1579 = vst [vmem:[%s3 + $0xd0] sm:$0xff] %v1547
  %1580 = vst [vmem:[%s3 + $0xd8] sm:$0xff] %v1548
  %1581 = vst [vmem:[%s3 + $0xe0] sm:$0xff] %v1549
  %1582 = vst [vmem:[%s3 + $0xe8] sm:$0xff] %v1550
  %1583 = vst [vmem:[%s3 + $0xf0] sm:$0xff] %v1551
  %1584 = vst [vmem:[%s3 + $0xf8] sm:$0xff] %v1552
  // Predicated region
  $region14: #{lightgcn_forward.2} parent=0 // pred_check
    _
  $region15: #{lightgcn_forward.2} parent=0 // pred_check_branch
    %1586 = sbr.rel (0) target = $region17
  $region16: #{lightgcn_forward.2} parent=0 // pred_region
    _
  $region17: #{lightgcn_forward.2} parent=0 // pred_fallthru
    _
  // Predicated region
  $region18: #{lightgcn_forward.2} parent=0 // pred_check
    _
  $region19: #{lightgcn_forward.2} parent=0 // pred_check_branch
    %1588 = sbr.rel (0) target = $region21
  $region20: #{lightgcn_forward.2} parent=0 // pred_region
    _
  $region21: #{lightgcn_forward.2} parent=0 // pred_fallthru
    _

</llo_original>
